<compile_context>
chip_gen: v7x
topology: tpu7x:2x2x1
jax: 0.10.0
libtpu: 0.0.40
codegen_flags: <defaults>
</compile_context>

<pallas_src>
import functools

import jax
import jax.numpy as jnp
from jax.experimental import pallas as pl
from jax.experimental.pallas import tpu as pltpu


# ----------------------------------------------------------------------------
# Fused Pallas kernel
# ----------------------------------------------------------------------------
def _encoder_kernel(x_ref, adj_ref,
                    w1_ref, a1s_ref, a1d_ref, b1_ref,
                    w2_ref, a2s_ref, a2d_ref, b2_ref,
                    w3_ref, a3s_ref, a3d_ref, b3_ref,
                    wmv_ref, bmv_ref,
                    out_ref, *, heads, hidden, c_out):
    x = x_ref[...]                       # (N, F_in)
    adj = adj_ref[...]                   # (N, N) mask, adj[i, j]=1 <=> edge j -> i

    # Hoisted once, shared by all three GAT layers: additive mask bias.
    # Every row has a self-loop, so each softmax row has >= 1 unmasked entry.
    neg = jnp.where(adj > 0, 0.0, -1e30)

    def gat(xin, w_ref, as_ref, ad_ref, b_ref, nheads, cout, relu):
        # h = x @ W for all heads, packed along lanes: (N, nheads*cout)
        h = jnp.dot(xin, w_ref[...], preferred_element_type=jnp.float32)
        # Per-node attention logits via block-diagonal att matrices:
        #   s_all[j, hd] = <h_j^hd, att_src^hd>,  d_all[i, hd] = <h_i^hd, att_dst^hd>
        s_all = jnp.dot(h, as_ref[...], preferred_element_type=jnp.float32)  # (N, nheads)
        d_all = jnp.dot(h, ad_ref[...], preferred_element_type=jnp.float32)  # (N, nheads)
        s_t = jnp.transpose(s_all)                                           # (nheads, N)

        alphas, h_slices = [], []
        for hd in range(nheads):         # static, small (1 or 8): elementwise only
            e = d_all[:, hd:hd + 1] + s_t[hd:hd + 1, :]        # (N, N)
            e = jnp.maximum(e, 0.2 * e)                        # LeakyReLU(0.2)
            e = e + neg                                        # mask non-edges
            e = e - jnp.max(e, axis=-1, keepdims=True)
            p = jnp.exp(e)                # masked entries underflow to exactly 0
            denom = jnp.sum(p, axis=-1, keepdims=True)
            alphas.append(p * pl.reciprocal(denom, approx=True))
            h_slices.append(h[:, hd * cout:(hd + 1) * cout])

        # One MXU matmul with K = nheads*N instead of nheads tiny K=N dots.
        if nheads > 1:
            alpha_cat = jnp.concatenate(alphas, axis=1)        # (N, nheads*N)
            h_stack = jnp.concatenate(h_slices, axis=0)        # (nheads*N, cout)
        else:
            alpha_cat, h_stack = alphas[0], h_slices[0]
        out = jnp.dot(alpha_cat, h_stack, preferred_element_type=jnp.float32)
        out = out * (1.0 / nheads) + b_ref[...]                # mean over heads + bias
        if relu:
            out = jnp.maximum(out, 0.0)
        return out

    h1 = gat(x, w1_ref, a1s_ref, a1d_ref, b1_ref, heads, hidden, True)
    h2 = gat(h1, w2_ref, a2s_ref, a2d_ref, b2_ref, heads, hidden, True)
    h3 = gat(h2, w3_ref, a3s_ref, a3d_ref, b3_ref, 1, c_out, False)

    # Fused mean/var heads: one matmul against [Wm^T | Wv^T] (c_out, 2*c_out).
    mv = jnp.dot(h3, wmv_ref[...], preferred_element_type=jnp.float32) + bmv_ref[...]
    z_mean = mv[:, :c_out]
    z_var = jnp.clip(jnp.exp(mv[:, c_out:]), 1e-8, 100.0)

    # Single lane-contiguous output slab: [z_mean | z_var | feats].
    out_ref[...] = jnp.concatenate([z_mean, z_var, h3], axis=1)


# ----------------------------------------------------------------------------
# Wrapper
# ----------------------------------------------------------------------------
def _expand_att(att, nheads):
    """(nheads, c) attention vector -> block-diagonal (nheads*c, nheads) matrix,
    so that h @ A yields the per-head logits in one matmul."""
    c = att.shape[1]
    eye_h = jnp.eye(nheads, dtype=jnp.float32)
    return (att[:, :, None] * eye_h[:, None, :]).reshape(nheads * c, nheads)


def encoder_forward(params, x, adj):
    """Pallas implementation of Encoder.forward (eval mode, dropout=0)."""
    heads, hidden, c_out = params["heads"], params["hidden"], params["out"]
    n = x.shape[0]

    w_mv = jnp.concatenate([params["wm"].T, params["wv"].T], axis=1)   # (c_out, 2*c_out)
    b_mv = jnp.concatenate([params["bm"], params["bv"]]).reshape(1, 2 * c_out)

    kernel = functools.partial(_encoder_kernel, heads=heads, hidden=hidden, c_out=c_out)
    vmem = pl.BlockSpec(memory_space=pltpu.MemorySpace.VMEM)

    out = pl.pallas_call(
        kernel,
        out_shape=jax.ShapeDtypeStruct((n, 3 * c_out), jnp.float32),
        in_specs=[vmem] * 16,
        out_specs=pl.BlockSpec(memory_space=pltpu.MemorySpace.VMEM),
    )(x, adj,
      params["w1"], _expand_att(params["as1"], heads), _expand_att(params["ad1"], heads),
      params["b1"].reshape(1, hidden),
      params["w2"], _expand_att(params["as2"], heads), _expand_att(params["ad2"], heads),
      params["b2"].reshape(1, hidden),
      params["w3"], _expand_att(params["as3"], 1), _expand_att(params["ad3"], 1),
      params["b3"].reshape(1, c_out),
      w_mv, b_mv)

    z_mean = out[:, :c_out]
    z_var = out[:, c_out:2 * c_out]
    feats = out[:, 2 * c_out:]
    return z_mean, z_var, feats


# ----------------------------------------------------------------------------
# Pure-JAX reference (same math, exact divide) for a sanity check
# ----------------------------------------------------------------------------
def _reference_forward(params, x, adj):
    def gat(xin, w, att_s, att_d, b, nheads, cout, relu):
        h = xin @ w
        acc = jnp.zeros((xin.shape[0], cout), jnp.float32)
        for hd in range(nheads):
            hh = h[:, hd * cout:(hd + 1) * cout]
            s = hh @ att_s[hd]
            d = hh @ att_d[hd]
            e = d[:, None] + s[None, :]
            e = jnp.where(e > 0, e, 0.2 * e)
            e = jnp.where(adj > 0, e, -jnp.inf)
            acc = acc + jax.nn.softmax(e, axis=-1) @ hh
        o = acc / nheads + b
        return jnp.maximum(o, 0.0) if relu else o

    h1 = gat(x, params["w1"], params["as1"], params["ad1"], params["b1"],
             params["heads"], params["hidden"], True)
    h2 = gat(h1, params["w2"], params["as2"], params["ad2"], params["b2"],
             params["heads"], params["hidden"], True)
    h3 = gat(h2, params["w3"], params["as3"], params["ad3"], params["b3"],
             1, params["out"], False)
    zm = h3 @ params["wm"].T + params["bm"]
    zv = jnp.clip(jnp.exp(h3 @ params["wv"].T + params["bv"]), 1e-8, 100.0)
    return zm, zv, h3


# ----------------------------------------------------------------------------
# Deterministic parameter construction (glorot/xavier uniform, zero biases)
# ----------------------------------------------------------------------------
def _glorot(key, shape):
    fan_in, fan_out = shape[0], shape[-1]
    limit = (6.0 / (fan_in + fan_out)) ** 0.5
    return jax.random.uniform(key, shape, jnp.float32, -limit, limit)


def make_params(key, in_channels, hidden_channels, out_channels, heads):
    keys = jax.random.split(key, 12)
    p = dict(heads=heads, hidden=hidden_channels, out=out_channels)
    # conv1
    p["w1"] = _glorot(keys[0], (in_channels, heads * hidden_channels))
    p["as1"] = _glorot(keys[1], (heads, hidden_channels))
    p["ad1"] = _glorot(keys[2], (heads, hidden_channels))
    p["b1"] = jnp.zeros((hidden_channels,), jnp.float32)
    # conv2
    p["w2"] = _glorot(keys[3], (hidden_channels, heads * hidden_channels))
    p["as2"] = _glorot(keys[4], (heads, hidden_channels))
    p["ad2"] = _glorot(keys[5], (heads, hidden_channels))
    p["b2"] = jnp.zeros((hidden_channels,), jnp.float32)
    # conv3 (heads=1)
    p["w3"] = _glorot(keys[6], (hidden_channels, out_channels))
    p["as3"] = _glorot(keys[7], (1, out_channels))
    p["ad3"] = _glorot(keys[8], (1, out_channels))
    p["b3"] = jnp.zeros((out_channels,), jnp.float32)
    # dense heads (PyTorch Linear: weight shape (out, in), xavier; zero bias)
    p["wm"] = _glorot(keys[9], (out_channels, out_channels))
    p["bm"] = jnp.zeros((out_channels,), jnp.float32)
    p["wv"] = _glorot(keys[10], (out_channels, out_channels))
    p["bv"] = jnp.zeros((out_channels,), jnp.float32)
    return p


def build_adjacency(edge_index, num_nodes):
    """Dense mask adj[i, j] = 1 for edge j -> i, with self-loops."""
    src, dst = edge_index[0], edge_index[1]
    adj = jnp.zeros((num_nodes, num_nodes), jnp.float32)
    adj = adj.at[dst, src].set(1.0)
    adj = jnp.maximum(adj, jnp.eye(num_nodes, dtype=jnp.float32))
    return adj


# ----------------------------------------------------------------------------
if __name__ == "__main__":
    N = 16            # nodes
    IN_C = 8          # in_channels
    HID_C = 16        # hidden_channels  (heads*hidden = 128 -> native MXU K)
    OUT_C = 8         # out_channels
    HEADS = 8
    E = 40            # number of edges

    key = jax.random.PRNGKey(0)
    k_x, k_e, k_p = jax.random.split(key, 3)

    x = jax.random.normal(k_x, (N, IN_C), jnp.float32)
    edge_index = jax.random.randint(k_e, (2, E), 0, N, dtype=jnp.int32)
    adj = build_adjacency(edge_index, N)

    params = make_params(k_p, IN_C, HID_C, OUT_C, HEADS)

    z_mean, z_var, feats = encoder_forward(params, x, adj)
    jax.block_until_ready((z_mean, z_var, feats))

    assert z_mean.shape == (N, OUT_C)
    assert z_var.shape == (N, OUT_C)
    assert feats.shape == (N, OUT_C)
    assert bool(jnp.all(jnp.isfinite(z_mean)))
    assert bool(jnp.all((z_var >= 1e-8) & (z_var <= 100.0)))

    # Compare against the pure-JAX reference (loose tol: approx reciprocal).
    rm, rv, rf = _reference_forward(params, x, adj)

    def _close(a, b, tol=5e-2):
        return bool(jnp.max(jnp.abs(a - b) / (1.0 + jnp.abs(b))) < tol)

    assert _close(z_mean, rm) and _close(z_var, rv) and _close(feats, rf)

    print("KERNEL_OK")
</pallas_src>

<mosaic_0001>
module attributes {stable_mosaic.version = 11 : i64} {
  func.func @_encoder_kernel(%arg0: memref<16x8xf32, #tpu.memory_space<vmem>>, %arg1: memref<16x16xf32, #tpu.memory_space<vmem>>, %arg2: memref<8x128xf32, #tpu.memory_space<vmem>>, %arg3: memref<128x8xf32, #tpu.memory_space<vmem>>, %arg4: memref<128x8xf32, #tpu.memory_space<vmem>>, %arg5: memref<1x16xf32, #tpu.memory_space<vmem>>, %arg6: memref<16x128xf32, #tpu.memory_space<vmem>>, %arg7: memref<128x8xf32, #tpu.memory_space<vmem>>, %arg8: memref<128x8xf32, #tpu.memory_space<vmem>>, %arg9: memref<1x16xf32, #tpu.memory_space<vmem>>, %arg10: memref<16x8xf32, #tpu.memory_space<vmem>>, %arg11: memref<8x1xf32, #tpu.memory_space<vmem>>, %arg12: memref<8x1xf32, #tpu.memory_space<vmem>>, %arg13: memref<1x8xf32, #tpu.memory_space<vmem>>, %arg14: memref<8x16xf32, #tpu.memory_space<vmem>>, %arg15: memref<1x16xf32, #tpu.memory_space<vmem>>, %arg16: memref<16x24xf32, #tpu.memory_space<vmem>>) attributes {dimension_semantics = [], scalar_prefetch = 0 : i64, scratch_operands = 0 : i64, tpu.core_type = #tpu.core_type<tc>} {
    %c0 = arith.constant 0 : index
    %c0_0 = arith.constant 0 : index
    %0 = vector.load %arg0[%c0, %c0_0] : memref<16x8xf32, #tpu.memory_space<vmem>>, vector<16x8xf32>
    %c0_1 = arith.constant 0 : index
    %c0_2 = arith.constant 0 : index
    %1 = vector.load %arg1[%c0_1, %c0_2] : memref<16x16xf32, #tpu.memory_space<vmem>>, vector<16x16xf32>
    %cst = arith.constant 0.000000e+00 : f32
    %2 = vector.broadcast %cst : f32 to vector<16x16xf32>
    %3 = arith.cmpf ogt, %1, %2 : vector<16x16xf32>
    %cst_3 = arith.constant 0.000000e+00 : f32
    %cst_4 = arith.constant -1.000000e+30 : f32
    %4 = vector.broadcast %cst_3 : f32 to vector<16x16xf32>
    %5 = vector.broadcast %cst_4 : f32 to vector<16x16xf32>
    %6 = arith.select %3, %4, %5 : vector<16x16xi1>, vector<16x16xf32>
    %c0_5 = arith.constant 0 : index
    %c0_6 = arith.constant 0 : index
    %7 = vector.load %arg2[%c0_5, %c0_6] : memref<8x128xf32, #tpu.memory_space<vmem>>, vector<8x128xf32>
    %cst_7 = arith.constant dense<0.000000e+00> : vector<16x128xf32>
    %8 = tpu.matmul %0, %7, %cst_7 {dimension_numbers = #tpu.dot_dimension_numbers<[1], [0], [0], [1], [0, 0, 1, 1], [], []>} : vector<16x8xf32>, vector<8x128xf32>, vector<16x128xf32> -> vector<16x128xf32>
    %c0_8 = arith.constant 0 : index
    %c0_9 = arith.constant 0 : index
    %9 = vector.load %arg3[%c0_8, %c0_9] : memref<128x8xf32, #tpu.memory_space<vmem>>, vector<128x8xf32>
    %cst_10 = arith.constant dense<0.000000e+00> : vector<16x8xf32>
    %10 = tpu.matmul %8, %9, %cst_10 {dimension_numbers = #tpu.dot_dimension_numbers<[1], [0], [0], [1], [0, 0, 1, 1], [], []>} : vector<16x128xf32>, vector<128x8xf32>, vector<16x8xf32> -> vector<16x8xf32>
    %c0_11 = arith.constant 0 : index
    %c0_12 = arith.constant 0 : index
    %11 = vector.load %arg4[%c0_11, %c0_12] : memref<128x8xf32, #tpu.memory_space<vmem>>, vector<128x8xf32>
    %cst_13 = arith.constant dense<0.000000e+00> : vector<16x8xf32>
    %12 = tpu.matmul %8, %11, %cst_13 {dimension_numbers = #tpu.dot_dimension_numbers<[1], [0], [0], [1], [0, 0, 1, 1], [], []>} : vector<16x128xf32>, vector<128x8xf32>, vector<16x8xf32> -> vector<16x8xf32>
    %13 = tpu.transpose %10, [1, 0] : vector<16x8xf32> -> vector<8x16xf32>
    %14 = vector.extract_strided_slice %12 {offsets = [0, 0], sizes = [16, 1], strides = [1, 1]} : vector<16x8xf32> to vector<16x1xf32>
    %15 = vector.extract_strided_slice %13 {offsets = [0, 0], sizes = [1, 16], strides = [1, 1]} : vector<8x16xf32> to vector<1x16xf32>
    %16 = vector.broadcast %14 : vector<16x1xf32> to vector<16x16xf32>
    %17 = vector.broadcast %15 : vector<1x16xf32> to vector<16x16xf32>
    %18 = arith.addf %16, %17 : vector<16x16xf32>
    %cst_14 = arith.constant 2.000000e-01 : f32
    %19 = vector.broadcast %cst_14 : f32 to vector<16x16xf32>
    %20 = arith.mulf %19, %18 : vector<16x16xf32>
    %21 = arith.maximumf %18, %20 : vector<16x16xf32>
    %22 = arith.addf %21, %6 : vector<16x16xf32>
    %cst_15 = arith.constant dense<0xFF800000> : vector<16xf32>
    %23 = vector.multi_reduction <maximumf>, %22, %cst_15 [1] : vector<16x16xf32> to vector<16xf32>
    %24 = vector.shape_cast %23 : vector<16xf32> to vector<16x1xf32>
    %25 = vector.broadcast %24 : vector<16x1xf32> to vector<16x16xf32>
    %26 = arith.subf %22, %25 : vector<16x16xf32>
    %27 = math.exp %26 : vector<16x16xf32>
    %cst_16 = arith.constant dense<0.000000e+00> : vector<16xf32>
    %28 = vector.multi_reduction <add>, %27, %cst_16 [1] : vector<16x16xf32> to vector<16xf32>
    %29 = vector.shape_cast %28 : vector<16xf32> to vector<16x1xf32>
    %30 = tpu.reciprocal %29 {approx = true} : vector<16x1xf32> -> vector<16x1xf32>
    %31 = vector.broadcast %30 : vector<16x1xf32> to vector<16x16xf32>
    %32 = arith.mulf %27, %31 : vector<16x16xf32>
    %33 = vector.extract_strided_slice %8 {offsets = [0, 0], sizes = [16, 16], strides = [1, 1]} : vector<16x128xf32> to vector<16x16xf32>
    %34 = vector.extract_strided_slice %12 {offsets = [0, 1], sizes = [16, 1], strides = [1, 1]} : vector<16x8xf32> to vector<16x1xf32>
    %35 = vector.extract_strided_slice %13 {offsets = [1, 0], sizes = [1, 16], strides = [1, 1]} : vector<8x16xf32> to vector<1x16xf32>
    %36 = vector.broadcast %34 : vector<16x1xf32> to vector<16x16xf32>
    %37 = vector.broadcast %35 : vector<1x16xf32> to vector<16x16xf32>
    %38 = arith.addf %36, %37 : vector<16x16xf32>
    %cst_17 = arith.constant 2.000000e-01 : f32
    %39 = vector.broadcast %cst_17 : f32 to vector<16x16xf32>
    %40 = arith.mulf %39, %38 : vector<16x16xf32>
    %41 = arith.maximumf %38, %40 : vector<16x16xf32>
    %42 = arith.addf %41, %6 : vector<16x16xf32>
    %cst_18 = arith.constant dense<0xFF800000> : vector<16xf32>
    %43 = vector.multi_reduction <maximumf>, %42, %cst_18 [1] : vector<16x16xf32> to vector<16xf32>
    %44 = vector.shape_cast %43 : vector<16xf32> to vector<16x1xf32>
    %45 = vector.broadcast %44 : vector<16x1xf32> to vector<16x16xf32>
    %46 = arith.subf %42, %45 : vector<16x16xf32>
    %47 = math.exp %46 : vector<16x16xf32>
    %cst_19 = arith.constant dense<0.000000e+00> : vector<16xf32>
    %48 = vector.multi_reduction <add>, %47, %cst_19 [1] : vector<16x16xf32> to vector<16xf32>
    %49 = vector.shape_cast %48 : vector<16xf32> to vector<16x1xf32>
    %50 = tpu.reciprocal %49 {approx = true} : vector<16x1xf32> -> vector<16x1xf32>
    %51 = vector.broadcast %50 : vector<16x1xf32> to vector<16x16xf32>
    %52 = arith.mulf %47, %51 : vector<16x16xf32>
    %53 = vector.extract_strided_slice %8 {offsets = [0, 16], sizes = [16, 16], strides = [1, 1]} : vector<16x128xf32> to vector<16x16xf32>
    %54 = vector.extract_strided_slice %12 {offsets = [0, 2], sizes = [16, 1], strides = [1, 1]} : vector<16x8xf32> to vector<16x1xf32>
    %55 = vector.extract_strided_slice %13 {offsets = [2, 0], sizes = [1, 16], strides = [1, 1]} : vector<8x16xf32> to vector<1x16xf32>
    %56 = vector.broadcast %54 : vector<16x1xf32> to vector<16x16xf32>
    %57 = vector.broadcast %55 : vector<1x16xf32> to vector<16x16xf32>
    %58 = arith.addf %56, %57 : vector<16x16xf32>
    %cst_20 = arith.constant 2.000000e-01 : f32
    %59 = vector.broadcast %cst_20 : f32 to vector<16x16xf32>
    %60 = arith.mulf %59, %58 : vector<16x16xf32>
    %61 = arith.maximumf %58, %60 : vector<16x16xf32>
    %62 = arith.addf %61, %6 : vector<16x16xf32>
    %cst_21 = arith.constant dense<0xFF800000> : vector<16xf32>
    %63 = vector.multi_reduction <maximumf>, %62, %cst_21 [1] : vector<16x16xf32> to vector<16xf32>
    %64 = vector.shape_cast %63 : vector<16xf32> to vector<16x1xf32>
    %65 = vector.broadcast %64 : vector<16x1xf32> to vector<16x16xf32>
    %66 = arith.subf %62, %65 : vector<16x16xf32>
    %67 = math.exp %66 : vector<16x16xf32>
    %cst_22 = arith.constant dense<0.000000e+00> : vector<16xf32>
    %68 = vector.multi_reduction <add>, %67, %cst_22 [1] : vector<16x16xf32> to vector<16xf32>
    %69 = vector.shape_cast %68 : vector<16xf32> to vector<16x1xf32>
    %70 = tpu.reciprocal %69 {approx = true} : vector<16x1xf32> -> vector<16x1xf32>
    %71 = vector.broadcast %70 : vector<16x1xf32> to vector<16x16xf32>
    %72 = arith.mulf %67, %71 : vector<16x16xf32>
    %73 = vector.extract_strided_slice %8 {offsets = [0, 32], sizes = [16, 16], strides = [1, 1]} : vector<16x128xf32> to vector<16x16xf32>
    %74 = vector.extract_strided_slice %12 {offsets = [0, 3], sizes = [16, 1], strides = [1, 1]} : vector<16x8xf32> to vector<16x1xf32>
    %75 = vector.extract_strided_slice %13 {offsets = [3, 0], sizes = [1, 16], strides = [1, 1]} : vector<8x16xf32> to vector<1x16xf32>
    %76 = vector.broadcast %74 : vector<16x1xf32> to vector<16x16xf32>
    %77 = vector.broadcast %75 : vector<1x16xf32> to vector<16x16xf32>
    %78 = arith.addf %76, %77 : vector<16x16xf32>
    %cst_23 = arith.constant 2.000000e-01 : f32
    %79 = vector.broadcast %cst_23 : f32 to vector<16x16xf32>
    %80 = arith.mulf %79, %78 : vector<16x16xf32>
    %81 = arith.maximumf %78, %80 : vector<16x16xf32>
    %82 = arith.addf %81, %6 : vector<16x16xf32>
    %cst_24 = arith.constant dense<0xFF800000> : vector<16xf32>
    %83 = vector.multi_reduction <maximumf>, %82, %cst_24 [1] : vector<16x16xf32> to vector<16xf32>
    %84 = vector.shape_cast %83 : vector<16xf32> to vector<16x1xf32>
    %85 = vector.broadcast %84 : vector<16x1xf32> to vector<16x16xf32>
    %86 = arith.subf %82, %85 : vector<16x16xf32>
    %87 = math.exp %86 : vector<16x16xf32>
    %cst_25 = arith.constant dense<0.000000e+00> : vector<16xf32>
    %88 = vector.multi_reduction <add>, %87, %cst_25 [1] : vector<16x16xf32> to vector<16xf32>
    %89 = vector.shape_cast %88 : vector<16xf32> to vector<16x1xf32>
    %90 = tpu.reciprocal %89 {approx = true} : vector<16x1xf32> -> vector<16x1xf32>
    %91 = vector.broadcast %90 : vector<16x1xf32> to vector<16x16xf32>
    %92 = arith.mulf %87, %91 : vector<16x16xf32>
    %93 = vector.extract_strided_slice %8 {offsets = [0, 48], sizes = [16, 16], strides = [1, 1]} : vector<16x128xf32> to vector<16x16xf32>
    %94 = vector.extract_strided_slice %12 {offsets = [0, 4], sizes = [16, 1], strides = [1, 1]} : vector<16x8xf32> to vector<16x1xf32>
    %95 = vector.extract_strided_slice %13 {offsets = [4, 0], sizes = [1, 16], strides = [1, 1]} : vector<8x16xf32> to vector<1x16xf32>
    %96 = vector.broadcast %94 : vector<16x1xf32> to vector<16x16xf32>
    %97 = vector.broadcast %95 : vector<1x16xf32> to vector<16x16xf32>
    %98 = arith.addf %96, %97 : vector<16x16xf32>
    %cst_26 = arith.constant 2.000000e-01 : f32
    %99 = vector.broadcast %cst_26 : f32 to vector<16x16xf32>
    %100 = arith.mulf %99, %98 : vector<16x16xf32>
    %101 = arith.maximumf %98, %100 : vector<16x16xf32>
    %102 = arith.addf %101, %6 : vector<16x16xf32>
    %cst_27 = arith.constant dense<0xFF800000> : vector<16xf32>
    %103 = vector.multi_reduction <maximumf>, %102, %cst_27 [1] : vector<16x16xf32> to vector<16xf32>
    %104 = vector.shape_cast %103 : vector<16xf32> to vector<16x1xf32>
    %105 = vector.broadcast %104 : vector<16x1xf32> to vector<16x16xf32>
    %106 = arith.subf %102, %105 : vector<16x16xf32>
    %107 = math.exp %106 : vector<16x16xf32>
    %cst_28 = arith.constant dense<0.000000e+00> : vector<16xf32>
    %108 = vector.multi_reduction <add>, %107, %cst_28 [1] : vector<16x16xf32> to vector<16xf32>
    %109 = vector.shape_cast %108 : vector<16xf32> to vector<16x1xf32>
    %110 = tpu.reciprocal %109 {approx = true} : vector<16x1xf32> -> vector<16x1xf32>
    %111 = vector.broadcast %110 : vector<16x1xf32> to vector<16x16xf32>
    %112 = arith.mulf %107, %111 : vector<16x16xf32>
    %113 = vector.extract_strided_slice %8 {offsets = [0, 64], sizes = [16, 16], strides = [1, 1]} : vector<16x128xf32> to vector<16x16xf32>
    %114 = vector.extract_strided_slice %12 {offsets = [0, 5], sizes = [16, 1], strides = [1, 1]} : vector<16x8xf32> to vector<16x1xf32>
    %115 = vector.extract_strided_slice %13 {offsets = [5, 0], sizes = [1, 16], strides = [1, 1]} : vector<8x16xf32> to vector<1x16xf32>
    %116 = vector.broadcast %114 : vector<16x1xf32> to vector<16x16xf32>
    %117 = vector.broadcast %115 : vector<1x16xf32> to vector<16x16xf32>
    %118 = arith.addf %116, %117 : vector<16x16xf32>
    %cst_29 = arith.constant 2.000000e-01 : f32
    %119 = vector.broadcast %cst_29 : f32 to vector<16x16xf32>
    %120 = arith.mulf %119, %118 : vector<16x16xf32>
    %121 = arith.maximumf %118, %120 : vector<16x16xf32>
    %122 = arith.addf %121, %6 : vector<16x16xf32>
    %cst_30 = arith.constant dense<0xFF800000> : vector<16xf32>
    %123 = vector.multi_reduction <maximumf>, %122, %cst_30 [1] : vector<16x16xf32> to vector<16xf32>
    %124 = vector.shape_cast %123 : vector<16xf32> to vector<16x1xf32>
    %125 = vector.broadcast %124 : vector<16x1xf32> to vector<16x16xf32>
    %126 = arith.subf %122, %125 : vector<16x16xf32>
    %127 = math.exp %126 : vector<16x16xf32>
    %cst_31 = arith.constant dense<0.000000e+00> : vector<16xf32>
    %128 = vector.multi_reduction <add>, %127, %cst_31 [1] : vector<16x16xf32> to vector<16xf32>
    %129 = vector.shape_cast %128 : vector<16xf32> to vector<16x1xf32>
    %130 = tpu.reciprocal %129 {approx = true} : vector<16x1xf32> -> vector<16x1xf32>
    %131 = vector.broadcast %130 : vector<16x1xf32> to vector<16x16xf32>
    %132 = arith.mulf %127, %131 : vector<16x16xf32>
    %133 = vector.extract_strided_slice %8 {offsets = [0, 80], sizes = [16, 16], strides = [1, 1]} : vector<16x128xf32> to vector<16x16xf32>
    %134 = vector.extract_strided_slice %12 {offsets = [0, 6], sizes = [16, 1], strides = [1, 1]} : vector<16x8xf32> to vector<16x1xf32>
    %135 = vector.extract_strided_slice %13 {offsets = [6, 0], sizes = [1, 16], strides = [1, 1]} : vector<8x16xf32> to vector<1x16xf32>
    %136 = vector.broadcast %134 : vector<16x1xf32> to vector<16x16xf32>
    %137 = vector.broadcast %135 : vector<1x16xf32> to vector<16x16xf32>
    %138 = arith.addf %136, %137 : vector<16x16xf32>
    %cst_32 = arith.constant 2.000000e-01 : f32
    %139 = vector.broadcast %cst_32 : f32 to vector<16x16xf32>
    %140 = arith.mulf %139, %138 : vector<16x16xf32>
    %141 = arith.maximumf %138, %140 : vector<16x16xf32>
    %142 = arith.addf %141, %6 : vector<16x16xf32>
    %cst_33 = arith.constant dense<0xFF800000> : vector<16xf32>
    %143 = vector.multi_reduction <maximumf>, %142, %cst_33 [1] : vector<16x16xf32> to vector<16xf32>
    %144 = vector.shape_cast %143 : vector<16xf32> to vector<16x1xf32>
    %145 = vector.broadcast %144 : vector<16x1xf32> to vector<16x16xf32>
    %146 = arith.subf %142, %145 : vector<16x16xf32>
    %147 = math.exp %146 : vector<16x16xf32>
    %cst_34 = arith.constant dense<0.000000e+00> : vector<16xf32>
    %148 = vector.multi_reduction <add>, %147, %cst_34 [1] : vector<16x16xf32> to vector<16xf32>
    %149 = vector.shape_cast %148 : vector<16xf32> to vector<16x1xf32>
    %150 = tpu.reciprocal %149 {approx = true} : vector<16x1xf32> -> vector<16x1xf32>
    %151 = vector.broadcast %150 : vector<16x1xf32> to vector<16x16xf32>
    %152 = arith.mulf %147, %151 : vector<16x16xf32>
    %153 = vector.extract_strided_slice %8 {offsets = [0, 96], sizes = [16, 16], strides = [1, 1]} : vector<16x128xf32> to vector<16x16xf32>
    %154 = vector.extract_strided_slice %12 {offsets = [0, 7], sizes = [16, 1], strides = [1, 1]} : vector<16x8xf32> to vector<16x1xf32>
    %155 = vector.extract_strided_slice %13 {offsets = [7, 0], sizes = [1, 16], strides = [1, 1]} : vector<8x16xf32> to vector<1x16xf32>
    %156 = vector.broadcast %154 : vector<16x1xf32> to vector<16x16xf32>
    %157 = vector.broadcast %155 : vector<1x16xf32> to vector<16x16xf32>
    %158 = arith.addf %156, %157 : vector<16x16xf32>
    %cst_35 = arith.constant 2.000000e-01 : f32
    %159 = vector.broadcast %cst_35 : f32 to vector<16x16xf32>
    %160 = arith.mulf %159, %158 : vector<16x16xf32>
    %161 = arith.maximumf %158, %160 : vector<16x16xf32>
    %162 = arith.addf %161, %6 : vector<16x16xf32>
    %cst_36 = arith.constant dense<0xFF800000> : vector<16xf32>
    %163 = vector.multi_reduction <maximumf>, %162, %cst_36 [1] : vector<16x16xf32> to vector<16xf32>
    %164 = vector.shape_cast %163 : vector<16xf32> to vector<16x1xf32>
    %165 = vector.broadcast %164 : vector<16x1xf32> to vector<16x16xf32>
    %166 = arith.subf %162, %165 : vector<16x16xf32>
    %167 = math.exp %166 : vector<16x16xf32>
    %cst_37 = arith.constant dense<0.000000e+00> : vector<16xf32>
    %168 = vector.multi_reduction <add>, %167, %cst_37 [1] : vector<16x16xf32> to vector<16xf32>
    %169 = vector.shape_cast %168 : vector<16xf32> to vector<16x1xf32>
    %170 = tpu.reciprocal %169 {approx = true} : vector<16x1xf32> -> vector<16x1xf32>
    %171 = vector.broadcast %170 : vector<16x1xf32> to vector<16x16xf32>
    %172 = arith.mulf %167, %171 : vector<16x16xf32>
    %173 = vector.extract_strided_slice %8 {offsets = [0, 112], sizes = [16, 16], strides = [1, 1]} : vector<16x128xf32> to vector<16x16xf32>
    %174 = tpu.concatenate %32, %52, %72, %92, %112, %132, %152, %172 in 1 : vector<16x16xf32>, vector<16x16xf32>, vector<16x16xf32>, vector<16x16xf32>, vector<16x16xf32>, vector<16x16xf32>, vector<16x16xf32>, vector<16x16xf32> -> vector<16x128xf32>
    %175 = tpu.concatenate %33, %53, %73, %93, %113, %133, %153, %173 in 0 : vector<16x16xf32>, vector<16x16xf32>, vector<16x16xf32>, vector<16x16xf32>, vector<16x16xf32>, vector<16x16xf32>, vector<16x16xf32>, vector<16x16xf32> -> vector<128x16xf32>
    %cst_38 = arith.constant dense<0.000000e+00> : vector<16x16xf32>
    %176 = tpu.matmul %174, %175, %cst_38 {dimension_numbers = #tpu.dot_dimension_numbers<[1], [0], [0], [1], [0, 0, 1, 1], [], []>} : vector<16x128xf32>, vector<128x16xf32>, vector<16x16xf32> -> vector<16x16xf32>
    %cst_39 = arith.constant 1.250000e-01 : f32
    %177 = vector.broadcast %cst_39 : f32 to vector<16x16xf32>
    %178 = arith.mulf %176, %177 : vector<16x16xf32>
    %c0_40 = arith.constant 0 : index
    %c0_41 = arith.constant 0 : index
    %179 = vector.load %arg5[%c0_40, %c0_41] : memref<1x16xf32, #tpu.memory_space<vmem>>, vector<1x16xf32>
    %180 = vector.broadcast %179 : vector<1x16xf32> to vector<16x16xf32>
    %181 = arith.addf %178, %180 : vector<16x16xf32>
    %cst_42 = arith.constant 0.000000e+00 : f32
    %182 = vector.broadcast %cst_42 : f32 to vector<16x16xf32>
    %183 = arith.maximumf %181, %182 : vector<16x16xf32>
    %c0_43 = arith.constant 0 : index
    %c0_44 = arith.constant 0 : index
    %184 = vector.load %arg6[%c0_43, %c0_44] : memref<16x128xf32, #tpu.memory_space<vmem>>, vector<16x128xf32>
    %cst_45 = arith.constant dense<0.000000e+00> : vector<16x128xf32>
    %185 = tpu.matmul %183, %184, %cst_45 {dimension_numbers = #tpu.dot_dimension_numbers<[1], [0], [0], [1], [0, 0, 1, 1], [], []>} : vector<16x16xf32>, vector<16x128xf32>, vector<16x128xf32> -> vector<16x128xf32>
    %c0_46 = arith.constant 0 : index
    %c0_47 = arith.constant 0 : index
    %186 = vector.load %arg7[%c0_46, %c0_47] : memref<128x8xf32, #tpu.memory_space<vmem>>, vector<128x8xf32>
    %cst_48 = arith.constant dense<0.000000e+00> : vector<16x8xf32>
    %187 = tpu.matmul %185, %186, %cst_48 {dimension_numbers = #tpu.dot_dimension_numbers<[1], [0], [0], [1], [0, 0, 1, 1], [], []>} : vector<16x128xf32>, vector<128x8xf32>, vector<16x8xf32> -> vector<16x8xf32>
    %c0_49 = arith.constant 0 : index
    %c0_50 = arith.constant 0 : index
    %188 = vector.load %arg8[%c0_49, %c0_50] : memref<128x8xf32, #tpu.memory_space<vmem>>, vector<128x8xf32>
    %cst_51 = arith.constant dense<0.000000e+00> : vector<16x8xf32>
    %189 = tpu.matmul %185, %188, %cst_51 {dimension_numbers = #tpu.dot_dimension_numbers<[1], [0], [0], [1], [0, 0, 1, 1], [], []>} : vector<16x128xf32>, vector<128x8xf32>, vector<16x8xf32> -> vector<16x8xf32>
    %190 = tpu.transpose %187, [1, 0] : vector<16x8xf32> -> vector<8x16xf32>
    %191 = vector.extract_strided_slice %189 {offsets = [0, 0], sizes = [16, 1], strides = [1, 1]} : vector<16x8xf32> to vector<16x1xf32>
    %192 = vector.extract_strided_slice %190 {offsets = [0, 0], sizes = [1, 16], strides = [1, 1]} : vector<8x16xf32> to vector<1x16xf32>
    %193 = vector.broadcast %191 : vector<16x1xf32> to vector<16x16xf32>
    %194 = vector.broadcast %192 : vector<1x16xf32> to vector<16x16xf32>
    %195 = arith.addf %193, %194 : vector<16x16xf32>
    %cst_52 = arith.constant 2.000000e-01 : f32
    %196 = vector.broadcast %cst_52 : f32 to vector<16x16xf32>
    %197 = arith.mulf %196, %195 : vector<16x16xf32>
    %198 = arith.maximumf %195, %197 : vector<16x16xf32>
    %199 = arith.addf %198, %6 : vector<16x16xf32>
    %cst_53 = arith.constant dense<0xFF800000> : vector<16xf32>
    %200 = vector.multi_reduction <maximumf>, %199, %cst_53 [1] : vector<16x16xf32> to vector<16xf32>
    %201 = vector.shape_cast %200 : vector<16xf32> to vector<16x1xf32>
    %202 = vector.broadcast %201 : vector<16x1xf32> to vector<16x16xf32>
    %203 = arith.subf %199, %202 : vector<16x16xf32>
    %204 = math.exp %203 : vector<16x16xf32>
    %cst_54 = arith.constant dense<0.000000e+00> : vector<16xf32>
    %205 = vector.multi_reduction <add>, %204, %cst_54 [1] : vector<16x16xf32> to vector<16xf32>
    %206 = vector.shape_cast %205 : vector<16xf32> to vector<16x1xf32>
    %207 = tpu.reciprocal %206 {approx = true} : vector<16x1xf32> -> vector<16x1xf32>
    %208 = vector.broadcast %207 : vector<16x1xf32> to vector<16x16xf32>
    %209 = arith.mulf %204, %208 : vector<16x16xf32>
    %210 = vector.extract_strided_slice %185 {offsets = [0, 0], sizes = [16, 16], strides = [1, 1]} : vector<16x128xf32> to vector<16x16xf32>
    %211 = vector.extract_strided_slice %189 {offsets = [0, 1], sizes = [16, 1], strides = [1, 1]} : vector<16x8xf32> to vector<16x1xf32>
    %212 = vector.extract_strided_slice %190 {offsets = [1, 0], sizes = [1, 16], strides = [1, 1]} : vector<8x16xf32> to vector<1x16xf32>
    %213 = vector.broadcast %211 : vector<16x1xf32> to vector<16x16xf32>
    %214 = vector.broadcast %212 : vector<1x16xf32> to vector<16x16xf32>
    %215 = arith.addf %213, %214 : vector<16x16xf32>
    %cst_55 = arith.constant 2.000000e-01 : f32
    %216 = vector.broadcast %cst_55 : f32 to vector<16x16xf32>
    %217 = arith.mulf %216, %215 : vector<16x16xf32>
    %218 = arith.maximumf %215, %217 : vector<16x16xf32>
    %219 = arith.addf %218, %6 : vector<16x16xf32>
    %cst_56 = arith.constant dense<0xFF800000> : vector<16xf32>
    %220 = vector.multi_reduction <maximumf>, %219, %cst_56 [1] : vector<16x16xf32> to vector<16xf32>
    %221 = vector.shape_cast %220 : vector<16xf32> to vector<16x1xf32>
    %222 = vector.broadcast %221 : vector<16x1xf32> to vector<16x16xf32>
    %223 = arith.subf %219, %222 : vector<16x16xf32>
    %224 = math.exp %223 : vector<16x16xf32>
    %cst_57 = arith.constant dense<0.000000e+00> : vector<16xf32>
    %225 = vector.multi_reduction <add>, %224, %cst_57 [1] : vector<16x16xf32> to vector<16xf32>
    %226 = vector.shape_cast %225 : vector<16xf32> to vector<16x1xf32>
    %227 = tpu.reciprocal %226 {approx = true} : vector<16x1xf32> -> vector<16x1xf32>
    %228 = vector.broadcast %227 : vector<16x1xf32> to vector<16x16xf32>
    %229 = arith.mulf %224, %228 : vector<16x16xf32>
    %230 = vector.extract_strided_slice %185 {offsets = [0, 16], sizes = [16, 16], strides = [1, 1]} : vector<16x128xf32> to vector<16x16xf32>
    %231 = vector.extract_strided_slice %189 {offsets = [0, 2], sizes = [16, 1], strides = [1, 1]} : vector<16x8xf32> to vector<16x1xf32>
    %232 = vector.extract_strided_slice %190 {offsets = [2, 0], sizes = [1, 16], strides = [1, 1]} : vector<8x16xf32> to vector<1x16xf32>
    %233 = vector.broadcast %231 : vector<16x1xf32> to vector<16x16xf32>
    %234 = vector.broadcast %232 : vector<1x16xf32> to vector<16x16xf32>
    %235 = arith.addf %233, %234 : vector<16x16xf32>
    %cst_58 = arith.constant 2.000000e-01 : f32
    %236 = vector.broadcast %cst_58 : f32 to vector<16x16xf32>
    %237 = arith.mulf %236, %235 : vector<16x16xf32>
    %238 = arith.maximumf %235, %237 : vector<16x16xf32>
    %239 = arith.addf %238, %6 : vector<16x16xf32>
    %cst_59 = arith.constant dense<0xFF800000> : vector<16xf32>
    %240 = vector.multi_reduction <maximumf>, %239, %cst_59 [1] : vector<16x16xf32> to vector<16xf32>
    %241 = vector.shape_cast %240 : vector<16xf32> to vector<16x1xf32>
    %242 = vector.broadcast %241 : vector<16x1xf32> to vector<16x16xf32>
    %243 = arith.subf %239, %242 : vector<16x16xf32>
    %244 = math.exp %243 : vector<16x16xf32>
    %cst_60 = arith.constant dense<0.000000e+00> : vector<16xf32>
    %245 = vector.multi_reduction <add>, %244, %cst_60 [1] : vector<16x16xf32> to vector<16xf32>
    %246 = vector.shape_cast %245 : vector<16xf32> to vector<16x1xf32>
    %247 = tpu.reciprocal %246 {approx = true} : vector<16x1xf32> -> vector<16x1xf32>
    %248 = vector.broadcast %247 : vector<16x1xf32> to vector<16x16xf32>
    %249 = arith.mulf %244, %248 : vector<16x16xf32>
    %250 = vector.extract_strided_slice %185 {offsets = [0, 32], sizes = [16, 16], strides = [1, 1]} : vector<16x128xf32> to vector<16x16xf32>
    %251 = vector.extract_strided_slice %189 {offsets = [0, 3], sizes = [16, 1], strides = [1, 1]} : vector<16x8xf32> to vector<16x1xf32>
    %252 = vector.extract_strided_slice %190 {offsets = [3, 0], sizes = [1, 16], strides = [1, 1]} : vector<8x16xf32> to vector<1x16xf32>
    %253 = vector.broadcast %251 : vector<16x1xf32> to vector<16x16xf32>
    %254 = vector.broadcast %252 : vector<1x16xf32> to vector<16x16xf32>
    %255 = arith.addf %253, %254 : vector<16x16xf32>
    %cst_61 = arith.constant 2.000000e-01 : f32
    %256 = vector.broadcast %cst_61 : f32 to vector<16x16xf32>
    %257 = arith.mulf %256, %255 : vector<16x16xf32>
    %258 = arith.maximumf %255, %257 : vector<16x16xf32>
    %259 = arith.addf %258, %6 : vector<16x16xf32>
    %cst_62 = arith.constant dense<0xFF800000> : vector<16xf32>
    %260 = vector.multi_reduction <maximumf>, %259, %cst_62 [1] : vector<16x16xf32> to vector<16xf32>
    %261 = vector.shape_cast %260 : vector<16xf32> to vector<16x1xf32>
    %262 = vector.broadcast %261 : vector<16x1xf32> to vector<16x16xf32>
    %263 = arith.subf %259, %262 : vector<16x16xf32>
    %264 = math.exp %263 : vector<16x16xf32>
    %cst_63 = arith.constant dense<0.000000e+00> : vector<16xf32>
    %265 = vector.multi_reduction <add>, %264, %cst_63 [1] : vector<16x16xf32> to vector<16xf32>
    %266 = vector.shape_cast %265 : vector<16xf32> to vector<16x1xf32>
    %267 = tpu.reciprocal %266 {approx = true} : vector<16x1xf32> -> vector<16x1xf32>
    %268 = vector.broadcast %267 : vector<16x1xf32> to vector<16x16xf32>
    %269 = arith.mulf %264, %268 : vector<16x16xf32>
    %270 = vector.extract_strided_slice %185 {offsets = [0, 48], sizes = [16, 16], strides = [1, 1]} : vector<16x128xf32> to vector<16x16xf32>
    %271 = vector.extract_strided_slice %189 {offsets = [0, 4], sizes = [16, 1], strides = [1, 1]} : vector<16x8xf32> to vector<16x1xf32>
    %272 = vector.extract_strided_slice %190 {offsets = [4, 0], sizes = [1, 16], strides = [1, 1]} : vector<8x16xf32> to vector<1x16xf32>
    %273 = vector.broadcast %271 : vector<16x1xf32> to vector<16x16xf32>
    %274 = vector.broadcast %272 : vector<1x16xf32> to vector<16x16xf32>
    %275 = arith.addf %273, %274 : vector<16x16xf32>
    %cst_64 = arith.constant 2.000000e-01 : f32
    %276 = vector.broadcast %cst_64 : f32 to vector<16x16xf32>
    %277 = arith.mulf %276, %275 : vector<16x16xf32>
    %278 = arith.maximumf %275, %277 : vector<16x16xf32>
    %279 = arith.addf %278, %6 : vector<16x16xf32>
    %cst_65 = arith.constant dense<0xFF800000> : vector<16xf32>
    %280 = vector.multi_reduction <maximumf>, %279, %cst_65 [1] : vector<16x16xf32> to vector<16xf32>
    %281 = vector.shape_cast %280 : vector<16xf32> to vector<16x1xf32>
    %282 = vector.broadcast %281 : vector<16x1xf32> to vector<16x16xf32>
    %283 = arith.subf %279, %282 : vector<16x16xf32>
    %284 = math.exp %283 : vector<16x16xf32>
    %cst_66 = arith.constant dense<0.000000e+00> : vector<16xf32>
    %285 = vector.multi_reduction <add>, %284, %cst_66 [1] : vector<16x16xf32> to vector<16xf32>
    %286 = vector.shape_cast %285 : vector<16xf32> to vector<16x1xf32>
    %287 = tpu.reciprocal %286 {approx = true} : vector<16x1xf32> -> vector<16x1xf32>
    %288 = vector.broadcast %287 : vector<16x1xf32> to vector<16x16xf32>
    %289 = arith.mulf %284, %288 : vector<16x16xf32>
    %290 = vector.extract_strided_slice %185 {offsets = [0, 64], sizes = [16, 16], strides = [1, 1]} : vector<16x128xf32> to vector<16x16xf32>
    %291 = vector.extract_strided_slice %189 {offsets = [0, 5], sizes = [16, 1], strides = [1, 1]} : vector<16x8xf32> to vector<16x1xf32>
    %292 = vector.extract_strided_slice %190 {offsets = [5, 0], sizes = [1, 16], strides = [1, 1]} : vector<8x16xf32> to vector<1x16xf32>
    %293 = vector.broadcast %291 : vector<16x1xf32> to vector<16x16xf32>
    %294 = vector.broadcast %292 : vector<1x16xf32> to vector<16x16xf32>
    %295 = arith.addf %293, %294 : vector<16x16xf32>
    %cst_67 = arith.constant 2.000000e-01 : f32
    %296 = vector.broadcast %cst_67 : f32 to vector<16x16xf32>
    %297 = arith.mulf %296, %295 : vector<16x16xf32>
    %298 = arith.maximumf %295, %297 : vector<16x16xf32>
    %299 = arith.addf %298, %6 : vector<16x16xf32>
    %cst_68 = arith.constant dense<0xFF800000> : vector<16xf32>
    %300 = vector.multi_reduction <maximumf>, %299, %cst_68 [1] : vector<16x16xf32> to vector<16xf32>
    %301 = vector.shape_cast %300 : vector<16xf32> to vector<16x1xf32>
    %302 = vector.broadcast %301 : vector<16x1xf32> to vector<16x16xf32>
    %303 = arith.subf %299, %302 : vector<16x16xf32>
    %304 = math.exp %303 : vector<16x16xf32>
    %cst_69 = arith.constant dense<0.000000e+00> : vector<16xf32>
    %305 = vector.multi_reduction <add>, %304, %cst_69 [1] : vector<16x16xf32> to vector<16xf32>
    %306 = vector.shape_cast %305 : vector<16xf32> to vector<16x1xf32>
    %307 = tpu.reciprocal %306 {approx = true} : vector<16x1xf32> -> vector<16x1xf32>
    %308 = vector.broadcast %307 : vector<16x1xf32> to vector<16x16xf32>
    %309 = arith.mulf %304, %308 : vector<16x16xf32>
    %310 = vector.extract_strided_slice %185 {offsets = [0, 80], sizes = [16, 16], strides = [1, 1]} : vector<16x128xf32> to vector<16x16xf32>
    %311 = vector.extract_strided_slice %189 {offsets = [0, 6], sizes = [16, 1], strides = [1, 1]} : vector<16x8xf32> to vector<16x1xf32>
    %312 = vector.extract_strided_slice %190 {offsets = [6, 0], sizes = [1, 16], strides = [1, 1]} : vector<8x16xf32> to vector<1x16xf32>
    %313 = vector.broadcast %311 : vector<16x1xf32> to vector<16x16xf32>
    %314 = vector.broadcast %312 : vector<1x16xf32> to vector<16x16xf32>
    %315 = arith.addf %313, %314 : vector<16x16xf32>
    %cst_70 = arith.constant 2.000000e-01 : f32
    %316 = vector.broadcast %cst_70 : f32 to vector<16x16xf32>
    %317 = arith.mulf %316, %315 : vector<16x16xf32>
    %318 = arith.maximumf %315, %317 : vector<16x16xf32>
    %319 = arith.addf %318, %6 : vector<16x16xf32>
    %cst_71 = arith.constant dense<0xFF800000> : vector<16xf32>
    %320 = vector.multi_reduction <maximumf>, %319, %cst_71 [1] : vector<16x16xf32> to vector<16xf32>
    %321 = vector.shape_cast %320 : vector<16xf32> to vector<16x1xf32>
    %322 = vector.broadcast %321 : vector<16x1xf32> to vector<16x16xf32>
    %323 = arith.subf %319, %322 : vector<16x16xf32>
    %324 = math.exp %323 : vector<16x16xf32>
    %cst_72 = arith.constant dense<0.000000e+00> : vector<16xf32>
    %325 = vector.multi_reduction <add>, %324, %cst_72 [1] : vector<16x16xf32> to vector<16xf32>
    %326 = vector.shape_cast %325 : vector<16xf32> to vector<16x1xf32>
    %327 = tpu.reciprocal %326 {approx = true} : vector<16x1xf32> -> vector<16x1xf32>
    %328 = vector.broadcast %327 : vector<16x1xf32> to vector<16x16xf32>
    %329 = arith.mulf %324, %328 : vector<16x16xf32>
    %330 = vector.extract_strided_slice %185 {offsets = [0, 96], sizes = [16, 16], strides = [1, 1]} : vector<16x128xf32> to vector<16x16xf32>
    %331 = vector.extract_strided_slice %189 {offsets = [0, 7], sizes = [16, 1], strides = [1, 1]} : vector<16x8xf32> to vector<16x1xf32>
    %332 = vector.extract_strided_slice %190 {offsets = [7, 0], sizes = [1, 16], strides = [1, 1]} : vector<8x16xf32> to vector<1x16xf32>
    %333 = vector.broadcast %331 : vector<16x1xf32> to vector<16x16xf32>
    %334 = vector.broadcast %332 : vector<1x16xf32> to vector<16x16xf32>
    %335 = arith.addf %333, %334 : vector<16x16xf32>
    %cst_73 = arith.constant 2.000000e-01 : f32
    %336 = vector.broadcast %cst_73 : f32 to vector<16x16xf32>
    %337 = arith.mulf %336, %335 : vector<16x16xf32>
    %338 = arith.maximumf %335, %337 : vector<16x16xf32>
    %339 = arith.addf %338, %6 : vector<16x16xf32>
    %cst_74 = arith.constant dense<0xFF800000> : vector<16xf32>
    %340 = vector.multi_reduction <maximumf>, %339, %cst_74 [1] : vector<16x16xf32> to vector<16xf32>
    %341 = vector.shape_cast %340 : vector<16xf32> to vector<16x1xf32>
    %342 = vector.broadcast %341 : vector<16x1xf32> to vector<16x16xf32>
    %343 = arith.subf %339, %342 : vector<16x16xf32>
    %344 = math.exp %343 : vector<16x16xf32>
    %cst_75 = arith.constant dense<0.000000e+00> : vector<16xf32>
    %345 = vector.multi_reduction <add>, %344, %cst_75 [1] : vector<16x16xf32> to vector<16xf32>
    %346 = vector.shape_cast %345 : vector<16xf32> to vector<16x1xf32>
    %347 = tpu.reciprocal %346 {approx = true} : vector<16x1xf32> -> vector<16x1xf32>
    %348 = vector.broadcast %347 : vector<16x1xf32> to vector<16x16xf32>
    %349 = arith.mulf %344, %348 : vector<16x16xf32>
    %350 = vector.extract_strided_slice %185 {offsets = [0, 112], sizes = [16, 16], strides = [1, 1]} : vector<16x128xf32> to vector<16x16xf32>
    %351 = tpu.concatenate %209, %229, %249, %269, %289, %309, %329, %349 in 1 : vector<16x16xf32>, vector<16x16xf32>, vector<16x16xf32>, vector<16x16xf32>, vector<16x16xf32>, vector<16x16xf32>, vector<16x16xf32>, vector<16x16xf32> -> vector<16x128xf32>
    %352 = tpu.concatenate %210, %230, %250, %270, %290, %310, %330, %350 in 0 : vector<16x16xf32>, vector<16x16xf32>, vector<16x16xf32>, vector<16x16xf32>, vector<16x16xf32>, vector<16x16xf32>, vector<16x16xf32>, vector<16x16xf32> -> vector<128x16xf32>
    %cst_76 = arith.constant dense<0.000000e+00> : vector<16x16xf32>
    %353 = tpu.matmul %351, %352, %cst_76 {dimension_numbers = #tpu.dot_dimension_numbers<[1], [0], [0], [1], [0, 0, 1, 1], [], []>} : vector<16x128xf32>, vector<128x16xf32>, vector<16x16xf32> -> vector<16x16xf32>
    %cst_77 = arith.constant 1.250000e-01 : f32
    %354 = vector.broadcast %cst_77 : f32 to vector<16x16xf32>
    %355 = arith.mulf %353, %354 : vector<16x16xf32>
    %c0_78 = arith.constant 0 : index
    %c0_79 = arith.constant 0 : index
    %356 = vector.load %arg9[%c0_78, %c0_79] : memref<1x16xf32, #tpu.memory_space<vmem>>, vector<1x16xf32>
    %357 = vector.broadcast %356 : vector<1x16xf32> to vector<16x16xf32>
    %358 = arith.addf %355, %357 : vector<16x16xf32>
    %cst_80 = arith.constant 0.000000e+00 : f32
    %359 = vector.broadcast %cst_80 : f32 to vector<16x16xf32>
    %360 = arith.maximumf %358, %359 : vector<16x16xf32>
    %c0_81 = arith.constant 0 : index
    %c0_82 = arith.constant 0 : index
    %361 = vector.load %arg10[%c0_81, %c0_82] : memref<16x8xf32, #tpu.memory_space<vmem>>, vector<16x8xf32>
    %cst_83 = arith.constant dense<0.000000e+00> : vector<16x8xf32>
    %362 = tpu.matmul %360, %361, %cst_83 {dimension_numbers = #tpu.dot_dimension_numbers<[1], [0], [0], [1], [0, 0, 1, 1], [], []>} : vector<16x16xf32>, vector<16x8xf32>, vector<16x8xf32> -> vector<16x8xf32>
    %c0_84 = arith.constant 0 : index
    %c0_85 = arith.constant 0 : index
    %363 = vector.load %arg11[%c0_84, %c0_85] : memref<8x1xf32, #tpu.memory_space<vmem>>, vector<8x1xf32>
    %cst_86 = arith.constant dense<0.000000e+00> : vector<16x1xf32>
    %364 = tpu.matmul %362, %363, %cst_86 {dimension_numbers = #tpu.dot_dimension_numbers<[1], [0], [0], [1], [0, 0, 1, 1], [], []>} : vector<16x8xf32>, vector<8x1xf32>, vector<16x1xf32> -> vector<16x1xf32>
    %c0_87 = arith.constant 0 : index
    %c0_88 = arith.constant 0 : index
    %365 = vector.load %arg12[%c0_87, %c0_88] : memref<8x1xf32, #tpu.memory_space<vmem>>, vector<8x1xf32>
    %cst_89 = arith.constant dense<0.000000e+00> : vector<16x1xf32>
    %366 = tpu.matmul %362, %365, %cst_89 {dimension_numbers = #tpu.dot_dimension_numbers<[1], [0], [0], [1], [0, 0, 1, 1], [], []>} : vector<16x8xf32>, vector<8x1xf32>, vector<16x1xf32> -> vector<16x1xf32>
    %367 = tpu.transpose %364, [1, 0] : vector<16x1xf32> -> vector<1x16xf32>
    %368 = vector.broadcast %366 : vector<16x1xf32> to vector<16x16xf32>
    %369 = vector.broadcast %367 : vector<1x16xf32> to vector<16x16xf32>
    %370 = arith.addf %368, %369 : vector<16x16xf32>
    %cst_90 = arith.constant 2.000000e-01 : f32
    %371 = vector.broadcast %cst_90 : f32 to vector<16x16xf32>
    %372 = arith.mulf %371, %370 : vector<16x16xf32>
    %373 = arith.maximumf %370, %372 : vector<16x16xf32>
    %374 = arith.addf %373, %6 : vector<16x16xf32>
    %cst_91 = arith.constant dense<0xFF800000> : vector<16xf32>
    %375 = vector.multi_reduction <maximumf>, %374, %cst_91 [1] : vector<16x16xf32> to vector<16xf32>
    %376 = vector.shape_cast %375 : vector<16xf32> to vector<16x1xf32>
    %377 = vector.broadcast %376 : vector<16x1xf32> to vector<16x16xf32>
    %378 = arith.subf %374, %377 : vector<16x16xf32>
    %379 = math.exp %378 : vector<16x16xf32>
    %cst_92 = arith.constant dense<0.000000e+00> : vector<16xf32>
    %380 = vector.multi_reduction <add>, %379, %cst_92 [1] : vector<16x16xf32> to vector<16xf32>
    %381 = vector.shape_cast %380 : vector<16xf32> to vector<16x1xf32>
    %382 = tpu.reciprocal %381 {approx = true} : vector<16x1xf32> -> vector<16x1xf32>
    %383 = vector.broadcast %382 : vector<16x1xf32> to vector<16x16xf32>
    %384 = arith.mulf %379, %383 : vector<16x16xf32>
    %cst_93 = arith.constant dense<0.000000e+00> : vector<16x8xf32>
    %385 = tpu.matmul %384, %362, %cst_93 {dimension_numbers = #tpu.dot_dimension_numbers<[1], [0], [0], [1], [0, 0, 1, 1], [], []>} : vector<16x16xf32>, vector<16x8xf32>, vector<16x8xf32> -> vector<16x8xf32>
    %cst_94 = arith.constant 1.000000e+00 : f32
    %386 = vector.broadcast %cst_94 : f32 to vector<16x8xf32>
    %387 = arith.mulf %385, %386 : vector<16x8xf32>
    %c0_95 = arith.constant 0 : index
    %c0_96 = arith.constant 0 : index
    %388 = vector.load %arg13[%c0_95, %c0_96] : memref<1x8xf32, #tpu.memory_space<vmem>>, vector<1x8xf32>
    %389 = vector.broadcast %388 : vector<1x8xf32> to vector<16x8xf32>
    %390 = arith.addf %387, %389 : vector<16x8xf32>
    %c0_97 = arith.constant 0 : index
    %c0_98 = arith.constant 0 : index
    %391 = vector.load %arg14[%c0_97, %c0_98] : memref<8x16xf32, #tpu.memory_space<vmem>>, vector<8x16xf32>
    %cst_99 = arith.constant dense<0.000000e+00> : vector<16x16xf32>
    %392 = tpu.matmul %390, %391, %cst_99 {dimension_numbers = #tpu.dot_dimension_numbers<[1], [0], [0], [1], [0, 0, 1, 1], [], []>} : vector<16x8xf32>, vector<8x16xf32>, vector<16x16xf32> -> vector<16x16xf32>
    %c0_100 = arith.constant 0 : index
    %c0_101 = arith.constant 0 : index
    %393 = vector.load %arg15[%c0_100, %c0_101] : memref<1x16xf32, #tpu.memory_space<vmem>>, vector<1x16xf32>
    %394 = vector.broadcast %393 : vector<1x16xf32> to vector<16x16xf32>
    %395 = arith.addf %392, %394 : vector<16x16xf32>
    %396 = vector.extract_strided_slice %395 {offsets = [0, 0], sizes = [16, 8], strides = [1, 1]} : vector<16x16xf32> to vector<16x8xf32>
    %397 = vector.extract_strided_slice %395 {offsets = [0, 8], sizes = [16, 8], strides = [1, 1]} : vector<16x16xf32> to vector<16x8xf32>
    %398 = math.exp %397 : vector<16x8xf32>
    %cst_102 = arith.constant 9.99999993E-9 : f32
    %cst_103 = arith.constant 1.000000e+02 : f32
    %399 = vector.broadcast %cst_102 : f32 to vector<16x8xf32>
    %400 = arith.maximumf %399, %398 : vector<16x8xf32>
    %401 = vector.broadcast %cst_103 : f32 to vector<16x8xf32>
    %402 = arith.minimumf %401, %400 : vector<16x8xf32>
    %403 = tpu.concatenate %396, %402, %390 in 1 : vector<16x8xf32>, vector<16x8xf32>, vector<16x8xf32> -> vector<16x24xf32>
    %c0_104 = arith.constant 0 : index
    %c0_105 = arith.constant 0 : index
    %404 = vector.load %arg16[%c0_104, %c0_105] : memref<16x24xf32, #tpu.memory_space<vmem>>, vector<16x24xf32>
    tpu.vector_store %arg16[%c0_104, %c0_105], %403 {strides = array<i32>} : memref<16x24xf32, #tpu.memory_space<vmem>>, vector<16x24xf32>,
    return
  }
}

</mosaic_0001>

<llo_original>
// kernel: tpu_custom_call.1
$region0: #{tpu_custom_call.1}
  #allocation0 [shape = 'u32[]', space=smem, size = 0x4, offset = 0x4, fixed_abs, tag = 'smem constant byte address 0x4 - core index']
  #allocation1 [shape = 'u32[144,128]{1,0:T(1,128)}', space=vmem, size = 0x12000, scoped, tag = 'internal scratch']
  %s0 = inlined_call_operand.vmem [shape: f32[16,8], index: 0, kind: input, shape index: {}]
  %s1 = inlined_call_operand.vmem [shape: f32[16,16], index: 1, kind: input, shape index: {}]
  %s2 = inlined_call_operand.vmem [shape: f32[8,128], index: 2, kind: input, shape index: {}]
  %s3 = inlined_call_operand.vmem [shape: f32[128,8], index: 3, kind: input, shape index: {}]
  %s4 = inlined_call_operand.vmem [shape: f32[128,8], index: 4, kind: input, shape index: {}]
  %s5 = inlined_call_operand.vmem [shape: f32[1,16], index: 5, kind: input, shape index: {}]
  %s6 = inlined_call_operand.vmem [shape: f32[16,128], index: 6, kind: input, shape index: {}]
  %s7 = inlined_call_operand.vmem [shape: f32[128,8], index: 7, kind: input, shape index: {}]
  %s8 = inlined_call_operand.vmem [shape: f32[128,8], index: 8, kind: input, shape index: {}]
  %s9 = inlined_call_operand.vmem [shape: f32[1,16], index: 9, kind: input, shape index: {}]
  %s10 = inlined_call_operand.vmem [shape: f32[16,8], index: 10, kind: input, shape index: {}]
  %s11 = inlined_call_operand.vmem [shape: f32[8,1], index: 11, kind: input, shape index: {}]
  %s12 = inlined_call_operand.vmem [shape: f32[8,1], index: 12, kind: input, shape index: {}]
  %s13 = inlined_call_operand.vmem [shape: f32[1,8], index: 13, kind: input, shape index: {}]
  %s14 = inlined_call_operand.vmem [shape: f32[8,16], index: 14, kind: input, shape index: {}]
  %s15 = inlined_call_operand.vmem [shape: f32[1,16], index: 15, kind: input, shape index: {}]
  %s16 = inlined_call_operand.hbm [shape: f32[16,24], index: 16, kind: output, shape index: {}]
  %s17 = sld [smem:[#allocation0]]
  $region74: #{tpu_custom_call.1} parent=0
    _
  %s19 = ssub.s32 1, %s17
  %s20 = scalar_select 0, %s19, %s17
  $region1: #{tpu_custom_call.1} parent=0
    #allocation2 [shape = 'u8[8192]{0}', space=vmem, size = 0x2000, scoped, tag = 'output window, operand 0, single buffered']
    #allocation3 [shape = 's32[1]{0}', space=sflag, size = 0x4, scoped, tag = 'scoped memory for tpu_custom_call.1']
    %21 = vsyncpa [#allocation3], 0
    // Predicated region
    $region2: #{tpu_custom_call.1} parent=1 // pred_check
      _
    $region3: #{tpu_custom_call.1} parent=1 // pred_check_branch
      %23 = sbr.rel (0) target = $region5
    $region4: #{tpu_custom_call.1} parent=1 // pred_region
      _
    $region5: #{tpu_custom_call.1} parent=1 // pred_fallthru
      _
    // Predicated region
    $region6: #{tpu_custom_call.1} parent=1 // pred_check
      _
    $region7: #{tpu_custom_call.1} parent=1 // pred_check_branch
      %25 = sbr.rel (0) target = $region9
    $region8: #{tpu_custom_call.1} parent=1 // pred_region
      _
    $region9: #{tpu_custom_call.1} parent=1 // pred_fallthru
      _
    // Predicated region
    $region10: #{tpu_custom_call.1} parent=1 // pred_check
      _
    $region11: #{tpu_custom_call.1} parent=1 // pred_check_branch
      %27 = sbr.rel (0) target = $region13
    $region12: #{tpu_custom_call.1} parent=1 // pred_region
      _
    $region13: #{tpu_custom_call.1} parent=1 // pred_fallthru
      _
    // Predicated region
    $region14: #{tpu_custom_call.1} parent=1 // pred_check
      _
    $region15: #{tpu_custom_call.1} parent=1 // pred_check_branch
      %29 = sbr.rel (0) target = $region17
    $region16: #{tpu_custom_call.1} parent=1 // pred_region
      _
    $region17: #{tpu_custom_call.1} parent=1 // pred_fallthru
      _
    // Predicated region
    $region18: #{tpu_custom_call.1} parent=1 // pred_check
      _
    $region19: #{tpu_custom_call.1} parent=1 // pred_check_branch
      %31 = sbr.rel (0) target = $region21
    $region20: #{tpu_custom_call.1} parent=1 // pred_region
      _
    $region21: #{tpu_custom_call.1} parent=1 // pred_fallthru
      _
    // Predicated region
    $region22: #{tpu_custom_call.1} parent=1 // pred_check
      _
    $region23: #{tpu_custom_call.1} parent=1 // pred_check_branch
      %33 = sbr.rel (0) target = $region25
    $region24: #{tpu_custom_call.1} parent=1 // pred_region
      _
    $region25: #{tpu_custom_call.1} parent=1 // pred_fallthru
      _
    // Predicated region
    $region26: #{tpu_custom_call.1} parent=1 // pred_check
      _
    $region27: #{tpu_custom_call.1} parent=1 // pred_check_branch
      %35 = sbr.rel (0) target = $region29
    $region28: #{tpu_custom_call.1} parent=1 // pred_region
      _
    $region29: #{tpu_custom_call.1} parent=1 // pred_fallthru
      _
    // Predicated region
    $region30: #{tpu_custom_call.1} parent=1 // pred_check
      _
    $region31: #{tpu_custom_call.1} parent=1 // pred_check_branch
      %37 = sbr.rel (0) target = $region33
    $region32: #{tpu_custom_call.1} parent=1 // pred_region
      _
    $region33: #{tpu_custom_call.1} parent=1 // pred_fallthru
      _
    // Predicated region
    $region34: #{tpu_custom_call.1} parent=1 // pred_check
      _
    $region35: #{tpu_custom_call.1} parent=1 // pred_check_branch
      %39 = sbr.rel (0) target = $region37
    $region36: #{tpu_custom_call.1} parent=1 // pred_region
      _
    $region37: #{tpu_custom_call.1} parent=1 // pred_fallthru
      _
    // Predicated region
    $region38: #{tpu_custom_call.1} parent=1 // pred_check
      _
    $region39: #{tpu_custom_call.1} parent=1 // pred_check_branch
      %41 = sbr.rel (0) target = $region41
    $region40: #{tpu_custom_call.1} parent=1 // pred_region
      _
    $region41: #{tpu_custom_call.1} parent=1 // pred_fallthru
      _
    // Predicated region
    $region42: #{tpu_custom_call.1} parent=1 // pred_check
      _
    $region43: #{tpu_custom_call.1} parent=1 // pred_check_branch
      %43 = sbr.rel (0) target = $region45
    $region44: #{tpu_custom_call.1} parent=1 // pred_region
      _
    $region45: #{tpu_custom_call.1} parent=1 // pred_fallthru
      _
    // Predicated region
    $region46: #{tpu_custom_call.1} parent=1 // pred_check
      _
    $region47: #{tpu_custom_call.1} parent=1 // pred_check_branch
      %45 = sbr.rel (0) target = $region49
    $region48: #{tpu_custom_call.1} parent=1 // pred_region
      _
    $region49: #{tpu_custom_call.1} parent=1 // pred_fallthru
      _
    // Predicated region
    $region50: #{tpu_custom_call.1} parent=1 // pred_check
      _
    $region51: #{tpu_custom_call.1} parent=1 // pred_check_branch
      %47 = sbr.rel (0) target = $region53
    $region52: #{tpu_custom_call.1} parent=1 // pred_region
      _
    $region53: #{tpu_custom_call.1} parent=1 // pred_fallthru
      _
    // Predicated region
    $region54: #{tpu_custom_call.1} parent=1 // pred_check
      _
    $region55: #{tpu_custom_call.1} parent=1 // pred_check_branch
      %49 = sbr.rel (0) target = $region57
    $region56: #{tpu_custom_call.1} parent=1 // pred_region
      _
    $region57: #{tpu_custom_call.1} parent=1 // pred_fallthru
      _
    // Predicated region
    $region58: #{tpu_custom_call.1} parent=1 // pred_check
      _
    $region59: #{tpu_custom_call.1} parent=1 // pred_check_branch
      %51 = sbr.rel (0) target = $region61
    $region60: #{tpu_custom_call.1} parent=1 // pred_region
      _
    $region61: #{tpu_custom_call.1} parent=1 // pred_fallthru
      _
    // Predicated region
    $region62: #{tpu_custom_call.1} parent=1 // pred_check
      _
    $region63: #{tpu_custom_call.1} parent=1 // pred_check_branch
      %53 = sbr.rel (0) target = $region65
    $region64: #{tpu_custom_call.1} parent=1 // pred_region
      _
    $region65: #{tpu_custom_call.1} parent=1 // pred_fallthru
      _
    %v54 = vld [vmem:[%s0] sm:$0xff]
    %v55 = vld [vmem:[%s0 + $0x8] sm:$0xff]
    %v56 = vld [vmem:[%s1] sm:$0xff]
    %v57 = vld [vmem:[%s1 + $0x8] sm:$0xff]
    %vm58 = vcmp.gt.f32.partialorder %v56, 0.0
    %vm59 = vcmp.gt.f32.partialorder %v57, 0.0
    %v60 = vsel %vm58, 0.0, -1e+30
    %v61 = vsel %vm59, 0.0, -1e+30
    %v62 = vld [vmem:[%s2] sm:$0xff]
    %vm63 = vcmask 64512
    %v65 = vsel %vm63, %v54, 0
    %v68 = vsel %vm63, %v55, 0
    %70 = vmatprep.subr.mxu0 0.0
    %71 = vmatpush1.msra.mxu0 %v62
    %72 = vmatprep.subr.mxu0 0.0
    %73 = vmatpush1.msra.mxu0 0.0
    %74 = vmatprep.subr.mxu0 0.0
    %75 = vmatpush1.msra.mxu0 0.0
    %76 = vmatprep.subr.mxu0 0.0
    %77 = vmatpush1.msra.mxu0 0.0
    %78 = vmatprep.subr.mxu0 0.0
    %79 = vmatpush1.msra.mxu0 0.0
    %80 = vmatprep.subr.mxu0 0.0
    %81 = vmatpush1.msra.mxu0 0.0
    %82 = vmatprep.subr.mxu0 0.0
    %83 = vmatpush1.msra.mxu0 0.0
    %84 = vmatprep.subr.mxu0 0.0
    %85 = vmatpush1.msra.mxu0 0.0
    %86 = vmatprep.subr.mxu0 0.0
    %87 = vmatpush1.msra.mxu0 0.0
    %88 = vmatprep.subr.mxu0 0.0
    %89 = vmatpush1.msra.mxu0 0.0
    %90 = vmatprep.subr.mxu0 0.0
    %91 = vmatpush1.msra.mxu0 0.0
    %92 = vmatprep.subr.mxu0 0.0
    %93 = vmatpush1.msra.mxu0 0.0
    %94 = vmatprep.subr.mxu0 0.0
    %95 = vmatpush1.msra.mxu0 0.0
    %96 = vmatprep.subr.mxu0 0.0
    %97 = vmatpush1.msra.mxu0 0.0
    %98 = vmatprep.subr.mxu0 0.0
    %99 = vmatpush1.msra.mxu0 0.0
    %100 = vmatprep.subr.mxu0 0.0
    %101 = vmatpush1.msra.mxu0 0.0
    %102 = vmatprep.subr.mxu0 0.0
    %103 = vmatpush1.msra.mxu0 0.0
    %104 = vmatprep.subr.mxu0 0.0
    %105 = vmatpush1.msra.mxu0 0.0
    %106 = vmatprep.subr.mxu0 0.0
    %107 = vmatpush1.msra.mxu0 0.0
    %108 = vmatprep.subr.mxu0 0.0
    %109 = vmatpush1.msra.mxu0 0.0
    %110 = vmatprep.subr.mxu0 0.0
    %111 = vmatpush1.msra.mxu0 0.0
    %112 = vmatprep.subr.mxu0 0.0
    %113 = vmatpush1.msra.mxu0 0.0
    %114 = vmatprep.subr.mxu0 0.0
    %115 = vmatpush1.msra.mxu0 0.0
    %116 = vmatprep.subr.mxu0 0.0
    %117 = vmatpush1.msra.mxu0 0.0
    %118 = vmatprep.subr.mxu0 0.0
    %119 = vmatpush1.msra.mxu0 0.0
    %120 = vmatprep.subr.mxu0 0.0
    %121 = vmatpush1.msra.mxu0 0.0
    %122 = vmatprep.subr.mxu0 0.0
    %123 = vmatpush1.msra.mxu0 0.0
    %124 = vmatprep.subr.mxu0 0.0
    %125 = vmatpush1.msra.mxu0 0.0
    %126 = vmatprep.subr.mxu0 0.0
    %127 = vmatpush1.msra.mxu0 0.0
    %128 = vmatprep.subr.mxu0 0.0
    %129 = vmatpush1.msra.mxu0 0.0
    %130 = vmatprep.subr.mxu0 0.0
    %131 = vmatpush1.msra.mxu0 0.0
    %132 = vmatprep.subr.mxu0 0.0
    %133 = vmatpush1.msra.mxu0 0.0
    %134 = vmatprep.mubr.f32.mxu0 0.0
    %135 = vmatmul.mubr.f32.gmra.mrb[0].mxu0 %v65
    %v136 = vpop.f32.mrb[0].mxu0
    %v137 = vadd.f32 0.0, %v136
    %v138 = vpop.f32.mrb[0].mxu0
    %139 = vmatprep.mubr.f32.mxu0 0.0
    %140 = vmatmul.mubr.f32.gmra.mrb[0].mxu0 %v68
    %v141 = vpop.f32.mrb[0].mxu0
    %v142 = vadd.f32 0.0, %v141
    %v143 = vpop.f32.mrb[0].mxu0
    %144 = vdwg.mxu0
    %v145 = vld [vmem:[%s3] sm:$0xff]
    %v146 = vld [vmem:[%s3 + $0x8] sm:$0xff]
    %v147 = vld [vmem:[%s3 + $0x10] sm:$0xff]
    %v148 = vld [vmem:[%s3 + $0x18] sm:$0xff]
    %v149 = vld [vmem:[%s3 + $0x20] sm:$0xff]
    %v150 = vld [vmem:[%s3 + $0x28] sm:$0xff]
    %v151 = vld [vmem:[%s3 + $0x30] sm:$0xff]
    %v152 = vld [vmem:[%s3 + $0x38] sm:$0xff]
    %v153 = vld [vmem:[%s3 + $0x40] sm:$0xff]
    %v154 = vld [vmem:[%s3 + $0x48] sm:$0xff]
    %v155 = vld [vmem:[%s3 + $0x50] sm:$0xff]
    %v156 = vld [vmem:[%s3 + $0x58] sm:$0xff]
    %v157 = vld [vmem:[%s3 + $0x60] sm:$0xff]
    %v158 = vld [vmem:[%s3 + $0x68] sm:$0xff]
    %v159 = vld [vmem:[%s3 + $0x70] sm:$0xff]
    %v160 = vld [vmem:[%s3 + $0x78] sm:$0xff]
    %161 = vmatprep.subr.mxu0 0.0
    %162 = vmatpush1.msra.mxu0 %v145
    %163 = vmatprep.subr.mxu0 0.0
    %164 = vmatpush1.msra.mxu0 %v146
    %165 = vmatprep.subr.mxu0 0.0
    %166 = vmatpush1.msra.mxu0 %v147
    %167 = vmatprep.subr.mxu0 0.0
    %168 = vmatpush1.msra.mxu0 %v148
    %169 = vmatprep.subr.mxu0 0.0
    %170 = vmatpush1.msra.mxu0 %v149
    %171 = vmatprep.subr.mxu0 0.0
    %172 = vmatpush1.msra.mxu0 %v150
    %173 = vmatprep.subr.mxu0 0.0
    %174 = vmatpush1.msra.mxu0 %v151
    %175 = vmatprep.subr.mxu0 0.0
    %176 = vmatpush1.msra.mxu0 %v152
    %177 = vmatprep.subr.mxu0 0.0
    %178 = vmatpush1.msra.mxu0 %v153
    %179 = vmatprep.subr.mxu0 0.0
    %180 = vmatpush1.msra.mxu0 %v154
    %181 = vmatprep.subr.mxu0 0.0
    %182 = vmatpush1.msra.mxu0 %v155
    %183 = vmatprep.subr.mxu0 0.0
    %184 = vmatpush1.msra.mxu0 %v156
    %185 = vmatprep.subr.mxu0 0.0
    %186 = vmatpush1.msra.mxu0 %v157
    %187 = vmatprep.subr.mxu0 0.0
    %188 = vmatpush1.msra.mxu0 %v158
    %189 = vmatprep.subr.mxu0 0.0
    %190 = vmatpush1.msra.mxu0 %v159
    %191 = vmatprep.subr.mxu0 0.0
    %192 = vmatpush1.msra.mxu0 %v160
    %193 = vmatprep.subr.mxu0 0.0
    %194 = vmatpush1.msra.mxu0 0.0
    %195 = vmatprep.subr.mxu0 0.0
    %196 = vmatpush1.msra.mxu0 0.0
    %197 = vmatprep.subr.mxu0 0.0
    %198 = vmatpush1.msra.mxu0 0.0
    %199 = vmatprep.subr.mxu0 0.0
    %200 = vmatpush1.msra.mxu0 0.0
    %201 = vmatprep.subr.mxu0 0.0
    %202 = vmatpush1.msra.mxu0 0.0
    %203 = vmatprep.subr.mxu0 0.0
    %204 = vmatpush1.msra.mxu0 0.0
    %205 = vmatprep.subr.mxu0 0.0
    %206 = vmatpush1.msra.mxu0 0.0
    %207 = vmatprep.subr.mxu0 0.0
    %208 = vmatpush1.msra.mxu0 0.0
    %209 = vmatprep.subr.mxu0 0.0
    %210 = vmatpush1.msra.mxu0 0.0
    %211 = vmatprep.subr.mxu0 0.0
    %212 = vmatpush1.msra.mxu0 0.0
    %213 = vmatprep.subr.mxu0 0.0
    %214 = vmatpush1.msra.mxu0 0.0
    %215 = vmatprep.subr.mxu0 0.0
    %216 = vmatpush1.msra.mxu0 0.0
    %217 = vmatprep.subr.mxu0 0.0
    %218 = vmatpush1.msra.mxu0 0.0
    %219 = vmatprep.subr.mxu0 0.0
    %220 = vmatpush1.msra.mxu0 0.0
    %221 = vmatprep.subr.mxu0 0.0
    %222 = vmatpush1.msra.mxu0 0.0
    %223 = vmatprep.subr.mxu0 0.0
    %224 = vmatpush1.msra.mxu0 0.0
    %225 = vmatprep.mubr.f32.mxu0 0.0
    %226 = vmatmul.mubr.f32.gmra.mrb[0].mxu0 %v137
    %v227 = vpop.f32.mrb[0].mxu0
    %v228 = vadd.f32 0.0, %v227
    %v229 = vpop.f32.mrb[0].mxu0
    %230 = vmatprep.mubr.f32.mxu0 0.0
    %231 = vmatmul.mubr.f32.gmra.mrb[0].mxu0 %v142
    %v232 = vpop.f32.mrb[0].mxu0
    %v233 = vadd.f32 0.0, %v232
    %v234 = vpop.f32.mrb[0].mxu0
    %235 = vdwg.mxu0
    %v236 = vld [vmem:[%s4] sm:$0xff]
    %v237 = vld [vmem:[%s4 + $0x8] sm:$0xff]
    %v238 = vld [vmem:[%s4 + $0x10] sm:$0xff]
    %v239 = vld [vmem:[%s4 + $0x18] sm:$0xff]
    %v240 = vld [vmem:[%s4 + $0x20] sm:$0xff]
    %v241 = vld [vmem:[%s4 + $0x28] sm:$0xff]
    %v242 = vld [vmem:[%s4 + $0x30] sm:$0xff]
    %v243 = vld [vmem:[%s4 + $0x38] sm:$0xff]
    %v244 = vld [vmem:[%s4 + $0x40] sm:$0xff]
    %v245 = vld [vmem:[%s4 + $0x48] sm:$0xff]
    %v246 = vld [vmem:[%s4 + $0x50] sm:$0xff]
    %v247 = vld [vmem:[%s4 + $0x58] sm:$0xff]
    %v248 = vld [vmem:[%s4 + $0x60] sm:$0xff]
    %v249 = vld [vmem:[%s4 + $0x68] sm:$0xff]
    %v250 = vld [vmem:[%s4 + $0x70] sm:$0xff]
    %v251 = vld [vmem:[%s4 + $0x78] sm:$0xff]
    %252 = vmatprep.subr.mxu0 0.0
    %253 = vmatpush1.msra.mxu0 %v236
    %254 = vmatprep.subr.mxu0 0.0
    %255 = vmatpush1.msra.mxu0 %v237
    %256 = vmatprep.subr.mxu0 0.0
    %257 = vmatpush1.msra.mxu0 %v238
    %258 = vmatprep.subr.mxu0 0.0
    %259 = vmatpush1.msra.mxu0 %v239
    %260 = vmatprep.subr.mxu0 0.0
    %261 = vmatpush1.msra.mxu0 %v240
    %262 = vmatprep.subr.mxu0 0.0
    %263 = vmatpush1.msra.mxu0 %v241
    %264 = vmatprep.subr.mxu0 0.0
    %265 = vmatpush1.msra.mxu0 %v242
    %266 = vmatprep.subr.mxu0 0.0
    %267 = vmatpush1.msra.mxu0 %v243
    %268 = vmatprep.subr.mxu0 0.0
    %269 = vmatpush1.msra.mxu0 %v244
    %270 = vmatprep.subr.mxu0 0.0
    %271 = vmatpush1.msra.mxu0 %v245
    %272 = vmatprep.subr.mxu0 0.0
    %273 = vmatpush1.msra.mxu0 %v246
    %274 = vmatprep.subr.mxu0 0.0
    %275 = vmatpush1.msra.mxu0 %v247
    %276 = vmatprep.subr.mxu0 0.0
    %277 = vmatpush1.msra.mxu0 %v248
    %278 = vmatprep.subr.mxu0 0.0
    %279 = vmatpush1.msra.mxu0 %v249
    %280 = vmatprep.subr.mxu0 0.0
    %281 = vmatpush1.msra.mxu0 %v250
    %282 = vmatprep.subr.mxu0 0.0
    %283 = vmatpush1.msra.mxu0 %v251
    %284 = vmatprep.subr.mxu0 0.0
    %285 = vmatpush1.msra.mxu0 0.0
    %286 = vmatprep.subr.mxu0 0.0
    %287 = vmatpush1.msra.mxu0 0.0
    %288 = vmatprep.subr.mxu0 0.0
    %289 = vmatpush1.msra.mxu0 0.0
    %290 = vmatprep.subr.mxu0 0.0
    %291 = vmatpush1.msra.mxu0 0.0
    %292 = vmatprep.subr.mxu0 0.0
    %293 = vmatpush1.msra.mxu0 0.0
    %294 = vmatprep.subr.mxu0 0.0
    %295 = vmatpush1.msra.mxu0 0.0
    %296 = vmatprep.subr.mxu0 0.0
    %297 = vmatpush1.msra.mxu0 0.0
    %298 = vmatprep.subr.mxu0 0.0
    %299 = vmatpush1.msra.mxu0 0.0
    %300 = vmatprep.subr.mxu0 0.0
    %301 = vmatpush1.msra.mxu0 0.0
    %302 = vmatprep.subr.mxu0 0.0
    %303 = vmatpush1.msra.mxu0 0.0
    %304 = vmatprep.subr.mxu0 0.0
    %305 = vmatpush1.msra.mxu0 0.0
    %306 = vmatprep.subr.mxu0 0.0
    %307 = vmatpush1.msra.mxu0 0.0
    %308 = vmatprep.subr.mxu0 0.0
    %309 = vmatpush1.msra.mxu0 0.0
    %310 = vmatprep.subr.mxu0 0.0
    %311 = vmatpush1.msra.mxu0 0.0
    %312 = vmatprep.subr.mxu0 0.0
    %313 = vmatpush1.msra.mxu0 0.0
    %314 = vmatprep.subr.mxu0 0.0
    %315 = vmatpush1.msra.mxu0 0.0
    %316 = vmatprep.mubr.f32.mxu0 0.0
    %317 = vmatmul.mubr.f32.gmra.mrb[0].mxu0 %v137
    %v318 = vpop.f32.mrb[0].mxu0
    %v319 = vadd.f32 0.0, %v318
    %v320 = vpop.f32.mrb[0].mxu0
    %321 = vmatprep.mubr.f32.mxu0 0.0
    %322 = vmatmul.mubr.f32.gmra.mrb[0].mxu0 %v142
    %v323 = vpop.f32.mrb[0].mxu0
    %v324 = vadd.f32 0.0, %v323
    %v325 = vpop.f32.mrb[0].mxu0
    %326 = vdwg.mxu0
    %327 = vxpose.xlu0.b32.start [1/16] %v228, 128
    %328 = vxpose.xlu0.b32.cont [2/16] %v233, 128
    %329 = vxpose.xlu0.b32.cont [3/16] 0.0, 128
    %330 = vxpose.xlu0.b32.cont [4/16] 0.0, 128
    %331 = vxpose.xlu0.b32.cont [5/16] 0.0, 128
    %332 = vxpose.xlu0.b32.cont [6/16] 0.0, 128
    %333 = vxpose.xlu0.b32.cont [7/16] 0.0, 128
    %334 = vxpose.xlu0.b32.cont [8/16] 0.0, 128
    %335 = vxpose.xlu0.b32.cont [9/16] 0.0, 128
    %336 = vxpose.xlu0.b32.cont [10/16] 0.0, 128
    %337 = vxpose.xlu0.b32.cont [11/16] 0.0, 128
    %338 = vxpose.xlu0.b32.cont [12/16] 0.0, 128
    %339 = vxpose.xlu0.b32.cont [13/16] 0.0, 128
    %340 = vxpose.xlu0.b32.cont [14/16] 0.0, 128
    %341 = vxpose.xlu0.b32.cont [15/16] 0.0, 128
    %342 = vxpose.xlu0.b32.end [16/16] 0.0, 128
    %v343 = vpop.trf.xlu0
    %v344 = vpop.trf.xlu0
    %v345 = vpop.trf.xlu0
    %v346 = vpop.trf.xlu0
    %v347 = vpop.trf.xlu0
    %v348 = vpop.trf.xlu0
    %v349 = vpop.trf.xlu0
    %v350 = vpop.trf.xlu0
    %v351 = vpop.trf.xlu0
    %v352 = vpop.trf.xlu0
    %v353 = vpop.trf.xlu0
    %v354 = vpop.trf.xlu0
    %v355 = vpop.trf.xlu0
    %v356 = vpop.trf.xlu0
    %v357 = vpop.trf.xlu0
    %v358 = vpop.trf.xlu0
    %360 = vset.pattern.permute.xlu0 0
    %361 = vperm.xlu0 %360, %v319
    %v362 = vpop.permute.xlu0 %361
    %365 = vset.pattern.permute.xlu0 0
    %366 = vperm.xlu0 %365, %v324
    %v367 = vpop.permute.xlu0 %366
    %v369 = vlaneseq
    %v370 = vshrl.u32 %v369, 7
    %v371 = vsub.s32 0, %v370
    %v372 = vrot.slane %v343, %v371
    %v373 = vadd.f32 %v362, %v372
    %v374 = vadd.f32 %v367, %v372
    %v375 = vmul.f32 %v373, 0.2
    %v376 = vmul.f32 %v374, 0.2
    %v377 = vmax.f32 %v373, %v375
    %v378 = vmax.f32 %v374, %v376
    %v379 = vadd.f32 %v377, %v60
    %v380 = vadd.f32 %v378, %v61
    %vm381 = vcmask 130048
    %v382 = vsel %vm381, %v379, -inf
    %383 = vmax.xlane.f32.xlu0 %v382
    %v384 = vpop.xlane.xlu0 %383
    %v385 = vsel %vm381, %v380, -inf
    %386 = vmax.xlane.f32.xlu0 %v385
    %v387 = vpop.xlane.xlu0 %386
    %v388 = vsub.f32 %v379, %v384
    %v389 = vsub.f32 %v380, %v387
    %v390 = vmul.f32 %v388, 1.442695
    %v391 = vpow.pop %v390
    %v392 = vmul.f32 %v389, 1.442695
    %v393 = vpow.pop %v392
    %v394 = vsel %vm381, %v391, 0.0
    %395 = vadd.xlane.f32.xlu0 %v394
    %v396 = vpop.xlane.xlu0 %395
    %v397 = vsel %vm381, %v393, 0.0
    %398 = vadd.xlane.f32.xlu0 %v397
    %v399 = vpop.xlane.xlu0 %398
    %v400 = vrcp.pop %v396
    %v401 = vrcp.pop %v399
    %v402 = vmul.f32 %v391, %v400
    %v403 = vmul.f32 %v393, %v401
    %404 = vset.pattern.permute.xlu0 1
    %405 = vperm.xlu0 %404, %v319
    %v406 = vpop.permute.xlu0 %405
    %408 = vset.pattern.permute.xlu0 1
    %409 = vperm.xlu0 %408, %v324
    %v410 = vpop.permute.xlu0 %409
    %v412 = vlaneseq
    %v413 = vshrl.u32 %v412, 7
    %v414 = vsub.s32 1, %v413
    %v415 = vrot.slane %v343, %v414
    %v416 = vadd.f32 %v406, %v415
    %v417 = vadd.f32 %v410, %v415
    %v418 = vmul.f32 %v416, 0.2
    %v419 = vmul.f32 %v417, 0.2
    %v420 = vmax.f32 %v416, %v418
    %v421 = vmax.f32 %v417, %v419
    %v422 = vadd.f32 %v420, %v60
    %v423 = vadd.f32 %v421, %v61
    %v424 = vsel %vm381, %v422, -inf
    %425 = vmax.xlane.f32.xlu0 %v424
    %v426 = vpop.xlane.xlu0 %425
    %v427 = vsel %vm381, %v423, -inf
    %428 = vmax.xlane.f32.xlu0 %v427
    %v429 = vpop.xlane.xlu0 %428
    %v430 = vsub.f32 %v422, %v426
    %v431 = vsub.f32 %v423, %v429
    %v432 = vmul.f32 %v430, 1.442695
    %v433 = vpow.pop %v432
    %v434 = vmul.f32 %v431, 1.442695
    %v435 = vpow.pop %v434
    %v436 = vsel %vm381, %v433, 0.0
    %437 = vadd.xlane.f32.xlu0 %v436
    %v438 = vpop.xlane.xlu0 %437
    %v439 = vsel %vm381, %v435, 0.0
    %440 = vadd.xlane.f32.xlu0 %v439
    %v441 = vpop.xlane.xlu0 %440
    %v442 = vrcp.pop %v438
    %v443 = vrcp.pop %v441
    %v444 = vmul.f32 %v433, %v442
    %v445 = vmul.f32 %v435, %v443
    %446 = vset.pattern.permute.xlu0 2
    %447 = vperm.xlu0 %446, %v319
    %v448 = vpop.permute.xlu0 %447
    %450 = vset.pattern.permute.xlu0 2
    %451 = vperm.xlu0 %450, %v324
    %v452 = vpop.permute.xlu0 %451
    %v454 = vlaneseq
    %v455 = vshrl.u32 %v454, 7
    %v456 = vsub.s32 2, %v455
    %v457 = vrot.slane %v343, %v456
    %v458 = vadd.f32 %v448, %v457
    %v459 = vadd.f32 %v452, %v457
    %v460 = vmul.f32 %v458, 0.2
    %v461 = vmul.f32 %v459, 0.2
    %v462 = vmax.f32 %v458, %v460
    %v463 = vmax.f32 %v459, %v461
    %v464 = vadd.f32 %v462, %v60
    %v465 = vadd.f32 %v463, %v61
    %v466 = vsel %vm381, %v464, -inf
    %467 = vmax.xlane.f32.xlu0 %v466
    %v468 = vpop.xlane.xlu0 %467
    %v469 = vsel %vm381, %v465, -inf
    %470 = vmax.xlane.f32.xlu0 %v469
    %v471 = vpop.xlane.xlu0 %470
    %v472 = vsub.f32 %v464, %v468
    %v473 = vsub.f32 %v465, %v471
    %v474 = vmul.f32 %v472, 1.442695
    %v475 = vpow.pop %v474
    %v476 = vmul.f32 %v473, 1.442695
    %v477 = vpow.pop %v476
    %v478 = vsel %vm381, %v475, 0.0
    %479 = vadd.xlane.f32.xlu0 %v478
    %v480 = vpop.xlane.xlu0 %479
    %v481 = vsel %vm381, %v477, 0.0
    %482 = vadd.xlane.f32.xlu0 %v481
    %v483 = vpop.xlane.xlu0 %482
    %v484 = vrcp.pop %v480
    %v485 = vrcp.pop %v483
    %v486 = vmul.f32 %v475, %v484
    %v487 = vmul.f32 %v477, %v485
    %488 = vset.pattern.permute.xlu0 3
    %489 = vperm.xlu0 %488, %v319
    %v490 = vpop.permute.xlu0 %489
    %492 = vset.pattern.permute.xlu0 3
    %493 = vperm.xlu0 %492, %v324
    %v494 = vpop.permute.xlu0 %493
    %v496 = vlaneseq
    %v497 = vshrl.u32 %v496, 7
    %v498 = vsub.s32 3, %v497
    %v499 = vrot.slane %v343, %v498
    %v500 = vadd.f32 %v490, %v499
    %v501 = vadd.f32 %v494, %v499
    %v502 = vmul.f32 %v500, 0.2
    %v503 = vmul.f32 %v501, 0.2
    %v504 = vmax.f32 %v500, %v502
    %v505 = vmax.f32 %v501, %v503
    %v506 = vadd.f32 %v504, %v60
    %v507 = vadd.f32 %v505, %v61
    %v508 = vsel %vm381, %v506, -inf
    %509 = vmax.xlane.f32.xlu0 %v508
    %v510 = vpop.xlane.xlu0 %509
    %v511 = vsel %vm381, %v507, -inf
    %512 = vmax.xlane.f32.xlu0 %v511
    %v513 = vpop.xlane.xlu0 %512
    %v514 = vsub.f32 %v506, %v510
    %v515 = vsub.f32 %v507, %v513
    %v516 = vmul.f32 %v514, 1.442695
    %v517 = vpow.pop %v516
    %v518 = vmul.f32 %v515, 1.442695
    %v519 = vpow.pop %v518
    %v520 = vsel %vm381, %v517, 0.0
    %521 = vadd.xlane.f32.xlu0 %v520
    %v522 = vpop.xlane.xlu0 %521
    %v523 = vsel %vm381, %v519, 0.0
    %524 = vadd.xlane.f32.xlu0 %v523
    %v525 = vpop.xlane.xlu0 %524
    %v526 = vrcp.pop %v522
    %v527 = vrcp.pop %v525
    %v528 = vmul.f32 %v517, %v526
    %v529 = vmul.f32 %v519, %v527
    %530 = vset.pattern.permute.xlu0 4
    %531 = vperm.xlu0 %530, %v319
    %v532 = vpop.permute.xlu0 %531
    %534 = vset.pattern.permute.xlu0 4
    %535 = vperm.xlu0 %534, %v324
    %v536 = vpop.permute.xlu0 %535
    %v538 = vlaneseq
    %v539 = vshrl.u32 %v538, 7
    %v540 = vsub.s32 4, %v539
    %v541 = vrot.slane %v343, %v540
    %v542 = vadd.f32 %v532, %v541
    %v543 = vadd.f32 %v536, %v541
    %v544 = vmul.f32 %v542, 0.2
    %v545 = vmul.f32 %v543, 0.2
    %v546 = vmax.f32 %v542, %v544
    %v547 = vmax.f32 %v543, %v545
    %v548 = vadd.f32 %v546, %v60
    %v549 = vadd.f32 %v547, %v61
    %v550 = vsel %vm381, %v548, -inf
    %551 = vmax.xlane.f32.xlu0 %v550
    %v552 = vpop.xlane.xlu0 %551
    %v553 = vsel %vm381, %v549, -inf
    %554 = vmax.xlane.f32.xlu0 %v553
    %v555 = vpop.xlane.xlu0 %554
    %v556 = vsub.f32 %v548, %v552
    %v557 = vsub.f32 %v549, %v555
    %v558 = vmul.f32 %v556, 1.442695
    %v559 = vpow.pop %v558
    %v560 = vmul.f32 %v557, 1.442695
    %v561 = vpow.pop %v560
    %v562 = vsel %vm381, %v559, 0.0
    %563 = vadd.xlane.f32.xlu0 %v562
    %v564 = vpop.xlane.xlu0 %563
    %v565 = vsel %vm381, %v561, 0.0
    %566 = vadd.xlane.f32.xlu0 %v565
    %v567 = vpop.xlane.xlu0 %566
    %v568 = vrcp.pop %v564
    %v569 = vrcp.pop %v567
    %v570 = vmul.f32 %v559, %v568
    %v571 = vmul.f32 %v561, %v569
    %572 = vset.pattern.permute.xlu0 5
    %573 = vperm.xlu0 %572, %v319
    %v574 = vpop.permute.xlu0 %573
    %576 = vset.pattern.permute.xlu0 5
    %577 = vperm.xlu0 %576, %v324
    %v578 = vpop.permute.xlu0 %577
    %v580 = vlaneseq
    %v581 = vshrl.u32 %v580, 7
    %v582 = vsub.s32 5, %v581
    %v583 = vrot.slane %v343, %v582
    %v584 = vadd.f32 %v574, %v583
    %v585 = vadd.f32 %v578, %v583
    %v586 = vmul.f32 %v584, 0.2
    %v587 = vmul.f32 %v585, 0.2
    %v588 = vmax.f32 %v584, %v586
    %v589 = vmax.f32 %v585, %v587
    %v590 = vadd.f32 %v588, %v60
    %v591 = vadd.f32 %v589, %v61
    %v592 = vsel %vm381, %v590, -inf
    %593 = vmax.xlane.f32.xlu0 %v592
    %v594 = vpop.xlane.xlu0 %593
    %v595 = vsel %vm381, %v591, -inf
    %596 = vmax.xlane.f32.xlu0 %v595
    %v597 = vpop.xlane.xlu0 %596
    %v598 = vsub.f32 %v590, %v594
    %v599 = vsub.f32 %v591, %v597
    %v600 = vmul.f32 %v598, 1.442695
    %v601 = vpow.pop %v600
    %v602 = vmul.f32 %v599, 1.442695
    %v603 = vpow.pop %v602
    %v604 = vsel %vm381, %v601, 0.0
    %605 = vadd.xlane.f32.xlu0 %v604
    %v606 = vpop.xlane.xlu0 %605
    %v607 = vsel %vm381, %v603, 0.0
    %608 = vadd.xlane.f32.xlu0 %v607
    %v609 = vpop.xlane.xlu0 %608
    %v610 = vrcp.pop %v606
    %v611 = vrcp.pop %v609
    %v612 = vmul.f32 %v601, %v610
    %v613 = vmul.f32 %v603, %v611
    %614 = vset.pattern.permute.xlu0 6
    %615 = vperm.xlu0 %614, %v319
    %v616 = vpop.permute.xlu0 %615
    %618 = vset.pattern.permute.xlu0 6
    %619 = vperm.xlu0 %618, %v324
    %v620 = vpop.permute.xlu0 %619
    %v622 = vlaneseq
    %v623 = vshrl.u32 %v622, 7
    %v624 = vsub.s32 6, %v623
    %v625 = vrot.slane %v343, %v624
    %v626 = vadd.f32 %v616, %v625
    %v627 = vadd.f32 %v620, %v625
    %v628 = vmul.f32 %v626, 0.2
    %v629 = vmul.f32 %v627, 0.2
    %v630 = vmax.f32 %v626, %v628
    %v631 = vmax.f32 %v627, %v629
    %v632 = vadd.f32 %v630, %v60
    %v633 = vadd.f32 %v631, %v61
    %v634 = vsel %vm381, %v632, -inf
    %635 = vmax.xlane.f32.xlu0 %v634
    %v636 = vpop.xlane.xlu0 %635
    %v637 = vsel %vm381, %v633, -inf
    %638 = vmax.xlane.f32.xlu0 %v637
    %v639 = vpop.xlane.xlu0 %638
    %v640 = vsub.f32 %v632, %v636
    %v641 = vsub.f32 %v633, %v639
    %v642 = vmul.f32 %v640, 1.442695
    %v643 = vpow.pop %v642
    %v644 = vmul.f32 %v641, 1.442695
    %v645 = vpow.pop %v644
    %v646 = vsel %vm381, %v643, 0.0
    %647 = vadd.xlane.f32.xlu0 %v646
    %v648 = vpop.xlane.xlu0 %647
    %v649 = vsel %vm381, %v645, 0.0
    %650 = vadd.xlane.f32.xlu0 %v649
    %v651 = vpop.xlane.xlu0 %650
    %v652 = vrcp.pop %v648
    %v653 = vrcp.pop %v651
    %v654 = vmul.f32 %v643, %v652
    %v655 = vmul.f32 %v645, %v653
    %656 = vset.pattern.permute.xlu0 7
    %657 = vperm.xlu0 %656, %v319
    %v658 = vpop.permute.xlu0 %657
    %660 = vset.pattern.permute.xlu0 7
    %661 = vperm.xlu0 %660, %v324
    %v662 = vpop.permute.xlu0 %661
    %v664 = vlaneseq
    %v665 = vshrl.u32 %v664, 7
    %v666 = vsub.s32 7, %v665
    %v667 = vrot.slane %v343, %v666
    %v668 = vadd.f32 %v658, %v667
    %v669 = vadd.f32 %v662, %v667
    %v670 = vmul.f32 %v668, 0.2
    %v671 = vmul.f32 %v669, 0.2
    %v672 = vmax.f32 %v668, %v670
    %v673 = vmax.f32 %v669, %v671
    %v674 = vadd.f32 %v672, %v60
    %v675 = vadd.f32 %v673, %v61
    %v676 = vsel %vm381, %v674, -inf
    %677 = vmax.xlane.f32.xlu0 %v676
    %v678 = vpop.xlane.xlu0 %677
    %v679 = vsel %vm381, %v675, -inf
    %680 = vmax.xlane.f32.xlu0 %v679
    %v681 = vpop.xlane.xlu0 %680
    %v682 = vsub.f32 %v674, %v678
    %v683 = vsub.f32 %v675, %v681
    %v684 = vmul.f32 %v682, 1.442695
    %v685 = vpow.pop %v684
    %v686 = vmul.f32 %v683, 1.442695
    %v687 = vpow.pop %v686
    %v688 = vsel %vm381, %v685, 0.0
    %689 = vadd.xlane.f32.xlu0 %v688
    %v690 = vpop.xlane.xlu0 %689
    %v691 = vsel %vm381, %v687, 0.0
    %692 = vadd.xlane.f32.xlu0 %v691
    %v693 = vpop.xlane.xlu0 %692
    %v694 = vrcp.pop %v690
    %v695 = vrcp.pop %v693
    %v696 = vmul.f32 %v685, %v694
    %v697 = vmul.f32 %v687, %v695
    %700 = vrot.lane.b32.xlu0 %v444, 16
    %v701 = vpop.permute.xlu0 %700
    %702 = vrot.lane.b32.xlu0 %v445, 16
    %v703 = vpop.permute.xlu0 %702
    %708 = vrot.lane.b32.xlu0 %v486, 32
    %v709 = vpop.permute.xlu0 %708
    %710 = vrot.lane.b32.xlu0 %v487, 32
    %v711 = vpop.permute.xlu0 %710
    %716 = vrot.lane.b32.xlu0 %v528, 48
    %v717 = vpop.permute.xlu0 %716
    %718 = vrot.lane.b32.xlu0 %v529, 48
    %v719 = vpop.permute.xlu0 %718
    %724 = vrot.lane.b32.xlu0 %v570, 64
    %v725 = vpop.permute.xlu0 %724
    %726 = vrot.lane.b32.xlu0 %v571, 64
    %v727 = vpop.permute.xlu0 %726
    %732 = vrot.lane.b32.xlu0 %v612, 80
    %v733 = vpop.permute.xlu0 %732
    %734 = vrot.lane.b32.xlu0 %v613, 80
    %v735 = vpop.permute.xlu0 %734
    %740 = vrot.lane.b32.xlu0 %v654, 96
    %v741 = vpop.permute.xlu0 %740
    %742 = vrot.lane.b32.xlu0 %v655, 96
    %v743 = vpop.permute.xlu0 %742
    %748 = vrot.lane.b32.xlu0 %v696, 112
    %v749 = vpop.permute.xlu0 %748
    %750 = vrot.lane.b32.xlu0 %v697, 112
    %v751 = vpop.permute.xlu0 %750
    %v754 = vsel %vm381, %v402, %v701
    %v755 = vsel %vm381, %v403, %v703
    %vm756 = vcmask 261120
    %v757 = vsel %vm756, %v754, %v709
    %v758 = vsel %vm756, %v755, %v711
    %vm759 = vcmask 392192
    %v760 = vsel %vm759, %v757, %v717
    %v761 = vsel %vm759, %v758, %v719
    %vm762 = vcmask 523264
    %v763 = vsel %vm762, %v760, %v725
    %v764 = vsel %vm762, %v761, %v727
    %vm765 = vcmask 654336
    %v766 = vsel %vm765, %v763, %v733
    %v767 = vsel %vm765, %v764, %v735
    %vm768 = vcmask 785408
    %v769 = vsel %vm768, %v766, %v741
    %v770 = vsel %vm768, %v767, %v743
    %vm771 = vcmask 916480
    %v772 = vsel %vm771, %v769, %v749
    %v773 = vsel %vm771, %v770, %v751
    %776 = vrot.lane.b32.xlu0 %v137, 112
    %v777 = vpop.permute.xlu0 %776
    %778 = vrot.lane.b32.xlu0 %v142, 112
    %v779 = vpop.permute.xlu0 %778
    %782 = vrot.lane.b32.xlu0 %v137, 96
    %v783 = vpop.permute.xlu0 %782
    %784 = vrot.lane.b32.xlu0 %v142, 96
    %v785 = vpop.permute.xlu0 %784
    %788 = vrot.lane.b32.xlu0 %v137, 80
    %v789 = vpop.permute.xlu0 %788
    %790 = vrot.lane.b32.xlu0 %v142, 80
    %v791 = vpop.permute.xlu0 %790
    %794 = vrot.lane.b32.xlu0 %v137, 64
    %v795 = vpop.permute.xlu0 %794
    %796 = vrot.lane.b32.xlu0 %v142, 64
    %v797 = vpop.permute.xlu0 %796
    %800 = vrot.lane.b32.xlu0 %v137, 48
    %v801 = vpop.permute.xlu0 %800
    %802 = vrot.lane.b32.xlu0 %v142, 48
    %v803 = vpop.permute.xlu0 %802
    %806 = vrot.lane.b32.xlu0 %v137, 32
    %v807 = vpop.permute.xlu0 %806
    %808 = vrot.lane.b32.xlu0 %v142, 32
    %v809 = vpop.permute.xlu0 %808
    %812 = vrot.lane.b32.xlu0 %v137, 16
    %v813 = vpop.permute.xlu0 %812
    %814 = vrot.lane.b32.xlu0 %v142, 16
    %v815 = vpop.permute.xlu0 %814
    %818 = vmatprep.subr.mxu0 0.0
    %819 = vmatpush1.msra.mxu0 %v137
    %820 = vmatprep.subr.mxu0 0.0
    %821 = vmatpush1.msra.mxu0 %v142
    %822 = vmatprep.subr.mxu0 0.0
    %823 = vmatpush1.msra.mxu0 %v777
    %824 = vmatprep.subr.mxu0 0.0
    %825 = vmatpush1.msra.mxu0 %v779
    %826 = vmatprep.subr.mxu0 0.0
    %827 = vmatpush1.msra.mxu0 %v783
    %828 = vmatprep.subr.mxu0 0.0
    %829 = vmatpush1.msra.mxu0 %v785
    %830 = vmatprep.subr.mxu0 0.0
    %831 = vmatpush1.msra.mxu0 %v789
    %832 = vmatprep.subr.mxu0 0.0
    %833 = vmatpush1.msra.mxu0 %v791
    %834 = vmatprep.subr.mxu0 0.0
    %835 = vmatpush1.msra.mxu0 %v795
    %836 = vmatprep.subr.mxu0 0.0
    %837 = vmatpush1.msra.mxu0 %v797
    %838 = vmatprep.subr.mxu0 0.0
    %839 = vmatpush1.msra.mxu0 %v801
    %840 = vmatprep.subr.mxu0 0.0
    %841 = vmatpush1.msra.mxu0 %v803
    %842 = vmatprep.subr.mxu0 0.0
    %843 = vmatpush1.msra.mxu0 %v807
    %844 = vmatprep.subr.mxu0 0.0
    %845 = vmatpush1.msra.mxu0 %v809
    %846 = vmatprep.subr.mxu0 0.0
    %847 = vmatpush1.msra.mxu0 %v813
    %848 = vmatprep.subr.mxu0 0.0
    %849 = vmatpush1.msra.mxu0 %v815
    %850 = vmatprep.subr.mxu0 0.0
    %851 = vmatpush1.msra.mxu0 0.0
    %852 = vmatprep.subr.mxu0 0.0
    %853 = vmatpush1.msra.mxu0 0.0
    %854 = vmatprep.subr.mxu0 0.0
    %855 = vmatpush1.msra.mxu0 0.0
    %856 = vmatprep.subr.mxu0 0.0
    %857 = vmatpush1.msra.mxu0 0.0
    %858 = vmatprep.subr.mxu0 0.0
    %859 = vmatpush1.msra.mxu0 0.0
    %860 = vmatprep.subr.mxu0 0.0
    %861 = vmatpush1.msra.mxu0 0.0
    %862 = vmatprep.subr.mxu0 0.0
    %863 = vmatpush1.msra.mxu0 0.0
    %864 = vmatprep.subr.mxu0 0.0
    %865 = vmatpush1.msra.mxu0 0.0
    %866 = vmatprep.subr.mxu0 0.0
    %867 = vmatpush1.msra.mxu0 0.0
    %868 = vmatprep.subr.mxu0 0.0
    %869 = vmatpush1.msra.mxu0 0.0
    %870 = vmatprep.subr.mxu0 0.0
    %871 = vmatpush1.msra.mxu0 0.0
    %872 = vmatprep.subr.mxu0 0.0
    %873 = vmatpush1.msra.mxu0 0.0
    %874 = vmatprep.subr.mxu0 0.0
    %875 = vmatpush1.msra.mxu0 0.0
    %876 = vmatprep.subr.mxu0 0.0
    %877 = vmatpush1.msra.mxu0 0.0
    %878 = vmatprep.subr.mxu0 0.0
    %879 = vmatpush1.msra.mxu0 0.0
    %880 = vmatprep.subr.mxu0 0.0
    %881 = vmatpush1.msra.mxu0 0.0
    %882 = vmatprep.mubr.f32.mxu0 0.0
    %883 = vmatmul.mubr.f32.gmra.mrb[0].mxu0 %v772
    %v884 = vpop.f32.mrb[0].mxu0
    %v885 = vadd.f32 0.0, %v884
    %v886 = vpop.f32.mrb[0].mxu0
    %887 = vmatprep.mubr.f32.mxu0 0.0
    %888 = vmatmul.mubr.f32.gmra.mrb[0].mxu0 %v773
    %v889 = vpop.f32.mrb[0].mxu0
    %v890 = vadd.f32 0.0, %v889
    %v891 = vpop.f32.mrb[0].mxu0
    %892 = vdwg.mxu0
    %v893 = vmul.f32 %v885, 0.125
    %v894 = vmul.f32 %v890, 0.125
    %v895 = vld [vmem:[%s5] sm:$0x1]
    %v897 = vlaneseq
    %v898 = vshrl.u32 %v897, 7
    %v899 = vsub.s32 0, %v898
    %v900 = vrot.slane %v895, %v899
    %v902 = vadd.f32 %v893, %v900
    %v903 = vadd.f32 %v894, %v900
    %v904 = vmax.f32 %v902, 0.0
    %v905 = vmax.f32 %v903, 0.0
    %v906 = vld [vmem:[%s6] sm:$0xff]
    %v907 = vld [vmem:[%s6 + $0x8] sm:$0xff]
    %v909 = vsel %vm381, %v904, 0
    %v912 = vsel %vm381, %v905, 0
    %914 = vmatprep.subr.mxu0 0.0
    %915 = vmatpush1.msra.mxu0 %v906
    %916 = vmatprep.subr.mxu0 0.0
    %917 = vmatpush1.msra.mxu0 %v907
    %918 = vmatprep.subr.mxu0 0.0
    %919 = vmatpush1.msra.mxu0 0.0
    %920 = vmatprep.subr.mxu0 0.0
    %921 = vmatpush1.msra.mxu0 0.0
    %922 = vmatprep.subr.mxu0 0.0
    %923 = vmatpush1.msra.mxu0 0.0
    %924 = vmatprep.subr.mxu0 0.0
    %925 = vmatpush1.msra.mxu0 0.0
    %926 = vmatprep.subr.mxu0 0.0
    %927 = vmatpush1.msra.mxu0 0.0
    %928 = vmatprep.subr.mxu0 0.0
    %929 = vmatpush1.msra.mxu0 0.0
    %930 = vmatprep.subr.mxu0 0.0
    %931 = vmatpush1.msra.mxu0 0.0
    %932 = vmatprep.subr.mxu0 0.0
    %933 = vmatpush1.msra.mxu0 0.0
    %934 = vmatprep.subr.mxu0 0.0
    %935 = vmatpush1.msra.mxu0 0.0
    %936 = vmatprep.subr.mxu0 0.0
    %937 = vmatpush1.msra.mxu0 0.0
    %938 = vmatprep.subr.mxu0 0.0
    %939 = vmatpush1.msra.mxu0 0.0
    %940 = vmatprep.subr.mxu0 0.0
    %941 = vmatpush1.msra.mxu0 0.0
    %942 = vmatprep.subr.mxu0 0.0
    %943 = vmatpush1.msra.mxu0 0.0
    %944 = vmatprep.subr.mxu0 0.0
    %945 = vmatpush1.msra.mxu0 0.0
    %946 = vmatprep.subr.mxu0 0.0
    %947 = vmatpush1.msra.mxu0 0.0
    %948 = vmatprep.subr.mxu0 0.0
    %949 = vmatpush1.msra.mxu0 0.0
    %950 = vmatprep.subr.mxu0 0.0
    %951 = vmatpush1.msra.mxu0 0.0
    %952 = vmatprep.subr.mxu0 0.0
    %953 = vmatpush1.msra.mxu0 0.0
    %954 = vmatprep.subr.mxu0 0.0
    %955 = vmatpush1.msra.mxu0 0.0
    %956 = vmatprep.subr.mxu0 0.0
    %957 = vmatpush1.msra.mxu0 0.0
    %958 = vmatprep.subr.mxu0 0.0
    %959 = vmatpush1.msra.mxu0 0.0
    %960 = vmatprep.subr.mxu0 0.0
    %961 = vmatpush1.msra.mxu0 0.0
    %962 = vmatprep.subr.mxu0 0.0
    %963 = vmatpush1.msra.mxu0 0.0
    %964 = vmatprep.subr.mxu0 0.0
    %965 = vmatpush1.msra.mxu0 0.0
    %966 = vmatprep.subr.mxu0 0.0
    %967 = vmatpush1.msra.mxu0 0.0
    %968 = vmatprep.subr.mxu0 0.0
    %969 = vmatpush1.msra.mxu0 0.0
    %970 = vmatprep.subr.mxu0 0.0
    %971 = vmatpush1.msra.mxu0 0.0
    %972 = vmatprep.subr.mxu0 0.0
    %973 = vmatpush1.msra.mxu0 0.0
    %974 = vmatprep.subr.mxu0 0.0
    %975 = vmatpush1.msra.mxu0 0.0
    %976 = vmatprep.subr.mxu0 0.0
    %977 = vmatpush1.msra.mxu0 0.0
    %978 = vmatprep.mubr.f32.mxu0 0.0
    %979 = vmatmul.mubr.f32.gmra.mrb[0].mxu0 %v909
    %v980 = vpop.f32.mrb[0].mxu0
    %v981 = vadd.f32 0.0, %v980
    %v982 = vpop.f32.mrb[0].mxu0
    %983 = vmatprep.mubr.f32.mxu0 0.0
    %984 = vmatmul.mubr.f32.gmra.mrb[0].mxu0 %v912
    %v985 = vpop.f32.mrb[0].mxu0
    %v986 = vadd.f32 0.0, %v985
    %v987 = vpop.f32.mrb[0].mxu0
    %988 = vdwg.mxu0
    %v989 = vld [vmem:[%s7] sm:$0xff]
    %v990 = vld [vmem:[%s7 + $0x8] sm:$0xff]
    %v991 = vld [vmem:[%s7 + $0x10] sm:$0xff]
    %v992 = vld [vmem:[%s7 + $0x18] sm:$0xff]
    %v993 = vld [vmem:[%s7 + $0x20] sm:$0xff]
    %v994 = vld [vmem:[%s7 + $0x28] sm:$0xff]
    %v995 = vld [vmem:[%s7 + $0x30] sm:$0xff]
    %v996 = vld [vmem:[%s7 + $0x38] sm:$0xff]
    %v997 = vld [vmem:[%s7 + $0x40] sm:$0xff]
    %v998 = vld [vmem:[%s7 + $0x48] sm:$0xff]
    %v999 = vld [vmem:[%s7 + $0x50] sm:$0xff]
    %v1000 = vld [vmem:[%s7 + $0x58] sm:$0xff]
    %v1001 = vld [vmem:[%s7 + $0x60] sm:$0xff]
    %v1002 = vld [vmem:[%s7 + $0x68] sm:$0xff]
    %v1003 = vld [vmem:[%s7 + $0x70] sm:$0xff]
    %v1004 = vld [vmem:[%s7 + $0x78] sm:$0xff]
    %1005 = vmatprep.subr.mxu0 0.0
    %1006 = vmatpush1.msra.mxu0 %v989
    %1007 = vmatprep.subr.mxu0 0.0
    %1008 = vmatpush1.msra.mxu0 %v990
    %1009 = vmatprep.subr.mxu0 0.0
    %1010 = vmatpush1.msra.mxu0 %v991
    %1011 = vmatprep.subr.mxu0 0.0
    %1012 = vmatpush1.msra.mxu0 %v992
    %1013 = vmatprep.subr.mxu0 0.0
    %1014 = vmatpush1.msra.mxu0 %v993
    %1015 = vmatprep.subr.mxu0 0.0
    %1016 = vmatpush1.msra.mxu0 %v994
    %1017 = vmatprep.subr.mxu0 0.0
    %1018 = vmatpush1.msra.mxu0 %v995
    %1019 = vmatprep.subr.mxu0 0.0
    %1020 = vmatpush1.msra.mxu0 %v996
    %1021 = vmatprep.subr.mxu0 0.0
    %1022 = vmatpush1.msra.mxu0 %v997
    %1023 = vmatprep.subr.mxu0 0.0
    %1024 = vmatpush1.msra.mxu0 %v998
    %1025 = vmatprep.subr.mxu0 0.0
    %1026 = vmatpush1.msra.mxu0 %v999
    %1027 = vmatprep.subr.mxu0 0.0
    %1028 = vmatpush1.msra.mxu0 %v1000
    %1029 = vmatprep.subr.mxu0 0.0
    %1030 = vmatpush1.msra.mxu0 %v1001
    %1031 = vmatprep.subr.mxu0 0.0
    %1032 = vmatpush1.msra.mxu0 %v1002
    %1033 = vmatprep.subr.mxu0 0.0
    %1034 = vmatpush1.msra.mxu0 %v1003
    %1035 = vmatprep.subr.mxu0 0.0
    %1036 = vmatpush1.msra.mxu0 %v1004
    %1037 = vmatprep.subr.mxu0 0.0
    %1038 = vmatpush1.msra.mxu0 0.0
    %1039 = vmatprep.subr.mxu0 0.0
    %1040 = vmatpush1.msra.mxu0 0.0
    %1041 = vmatprep.subr.mxu0 0.0
    %1042 = vmatpush1.msra.mxu0 0.0
    %1043 = vmatprep.subr.mxu0 0.0
    %1044 = vmatpush1.msra.mxu0 0.0
    %1045 = vmatprep.subr.mxu0 0.0
    %1046 = vmatpush1.msra.mxu0 0.0
    %1047 = vmatprep.subr.mxu0 0.0
    %1048 = vmatpush1.msra.mxu0 0.0
    %1049 = vmatprep.subr.mxu0 0.0
    %1050 = vmatpush1.msra.mxu0 0.0
    %1051 = vmatprep.subr.mxu0 0.0
    %1052 = vmatpush1.msra.mxu0 0.0
    %1053 = vmatprep.subr.mxu0 0.0
    %1054 = vmatpush1.msra.mxu0 0.0
    %1055 = vmatprep.subr.mxu0 0.0
    %1056 = vmatpush1.msra.mxu0 0.0
    %1057 = vmatprep.subr.mxu0 0.0
    %1058 = vmatpush1.msra.mxu0 0.0
    %1059 = vmatprep.subr.mxu0 0.0
    %1060 = vmatpush1.msra.mxu0 0.0
    %1061 = vmatprep.subr.mxu0 0.0
    %1062 = vmatpush1.msra.mxu0 0.0
    %1063 = vmatprep.subr.mxu0 0.0
    %1064 = vmatpush1.msra.mxu0 0.0
    %1065 = vmatprep.subr.mxu0 0.0
    %1066 = vmatpush1.msra.mxu0 0.0
    %1067 = vmatprep.subr.mxu0 0.0
    %1068 = vmatpush1.msra.mxu0 0.0
    %1069 = vmatprep.mubr.f32.mxu0 0.0
    %1070 = vmatmul.mubr.f32.gmra.mrb[0].mxu0 %v981
    %v1071 = vpop.f32.mrb[0].mxu0
    %v1072 = vadd.f32 0.0, %v1071
    %v1073 = vpop.f32.mrb[0].mxu0
    %1074 = vmatprep.mubr.f32.mxu0 0.0
    %1075 = vmatmul.mubr.f32.gmra.mrb[0].mxu0 %v986
    %v1076 = vpop.f32.mrb[0].mxu0
    %v1077 = vadd.f32 0.0, %v1076
    %v1078 = vpop.f32.mrb[0].mxu0
    %1079 = vdwg.mxu0
    %v1080 = vld [vmem:[%s8] sm:$0xff]
    %v1081 = vld [vmem:[%s8 + $0x8] sm:$0xff]
    %v1082 = vld [vmem:[%s8 + $0x10] sm:$0xff]
    %v1083 = vld [vmem:[%s8 + $0x18] sm:$0xff]
    %v1084 = vld [vmem:[%s8 + $0x20] sm:$0xff]
    %v1085 = vld [vmem:[%s8 + $0x28] sm:$0xff]
    %v1086 = vld [vmem:[%s8 + $0x30] sm:$0xff]
    %v1087 = vld [vmem:[%s8 + $0x38] sm:$0xff]
    %v1088 = vld [vmem:[%s8 + $0x40] sm:$0xff]
    %v1089 = vld [vmem:[%s8 + $0x48] sm:$0xff]
    %v1090 = vld [vmem:[%s8 + $0x50] sm:$0xff]
    %v1091 = vld [vmem:[%s8 + $0x58] sm:$0xff]
    %v1092 = vld [vmem:[%s8 + $0x60] sm:$0xff]
    %v1093 = vld [vmem:[%s8 + $0x68] sm:$0xff]
    %v1094 = vld [vmem:[%s8 + $0x70] sm:$0xff]
    %v1095 = vld [vmem:[%s8 + $0x78] sm:$0xff]
    %1096 = vmatprep.subr.mxu0 0.0
    %1097 = vmatpush1.msra.mxu0 %v1080
    %1098 = vmatprep.subr.mxu0 0.0
    %1099 = vmatpush1.msra.mxu0 %v1081
    %1100 = vmatprep.subr.mxu0 0.0
    %1101 = vmatpush1.msra.mxu0 %v1082
    %1102 = vmatprep.subr.mxu0 0.0
    %1103 = vmatpush1.msra.mxu0 %v1083
    %1104 = vmatprep.subr.mxu0 0.0
    %1105 = vmatpush1.msra.mxu0 %v1084
    %1106 = vmatprep.subr.mxu0 0.0
    %1107 = vmatpush1.msra.mxu0 %v1085
    %1108 = vmatprep.subr.mxu0 0.0
    %1109 = vmatpush1.msra.mxu0 %v1086
    %1110 = vmatprep.subr.mxu0 0.0
    %1111 = vmatpush1.msra.mxu0 %v1087
    %1112 = vmatprep.subr.mxu0 0.0
    %1113 = vmatpush1.msra.mxu0 %v1088
    %1114 = vmatprep.subr.mxu0 0.0
    %1115 = vmatpush1.msra.mxu0 %v1089
    %1116 = vmatprep.subr.mxu0 0.0
    %1117 = vmatpush1.msra.mxu0 %v1090
    %1118 = vmatprep.subr.mxu0 0.0
    %1119 = vmatpush1.msra.mxu0 %v1091
    %1120 = vmatprep.subr.mxu0 0.0
    %1121 = vmatpush1.msra.mxu0 %v1092
    %1122 = vmatprep.subr.mxu0 0.0
    %1123 = vmatpush1.msra.mxu0 %v1093
    %1124 = vmatprep.subr.mxu0 0.0
    %1125 = vmatpush1.msra.mxu0 %v1094
    %1126 = vmatprep.subr.mxu0 0.0
    %1127 = vmatpush1.msra.mxu0 %v1095
    %1128 = vmatprep.subr.mxu0 0.0
    %1129 = vmatpush1.msra.mxu0 0.0
    %1130 = vmatprep.subr.mxu0 0.0
    %1131 = vmatpush1.msra.mxu0 0.0
    %1132 = vmatprep.subr.mxu0 0.0
    %1133 = vmatpush1.msra.mxu0 0.0
    %1134 = vmatprep.subr.mxu0 0.0
    %1135 = vmatpush1.msra.mxu0 0.0
    %1136 = vmatprep.subr.mxu0 0.0
    %1137 = vmatpush1.msra.mxu0 0.0
    %1138 = vmatprep.subr.mxu0 0.0
    %1139 = vmatpush1.msra.mxu0 0.0
    %1140 = vmatprep.subr.mxu0 0.0
    %1141 = vmatpush1.msra.mxu0 0.0
    %1142 = vmatprep.subr.mxu0 0.0
    %1143 = vmatpush1.msra.mxu0 0.0
    %1144 = vmatprep.subr.mxu0 0.0
    %1145 = vmatpush1.msra.mxu0 0.0
    %1146 = vmatprep.subr.mxu0 0.0
    %1147 = vmatpush1.msra.mxu0 0.0
    %1148 = vmatprep.subr.mxu0 0.0
    %1149 = vmatpush1.msra.mxu0 0.0
    %1150 = vmatprep.subr.mxu0 0.0
    %1151 = vmatpush1.msra.mxu0 0.0
    %1152 = vmatprep.subr.mxu0 0.0
    %1153 = vmatpush1.msra.mxu0 0.0
    %1154 = vmatprep.subr.mxu0 0.0
    %1155 = vmatpush1.msra.mxu0 0.0
    %1156 = vmatprep.subr.mxu0 0.0
    %1157 = vmatpush1.msra.mxu0 0.0
    %1158 = vmatprep.subr.mxu0 0.0
    %1159 = vmatpush1.msra.mxu0 0.0
    %1160 = vmatprep.mubr.f32.mxu0 0.0
    %1161 = vmatmul.mubr.f32.gmra.mrb[0].mxu0 %v981
    %v1162 = vpop.f32.mrb[0].mxu0
    %v1163 = vadd.f32 0.0, %v1162
    %v1164 = vpop.f32.mrb[0].mxu0
    %1165 = vmatprep.mubr.f32.mxu0 0.0
    %1166 = vmatmul.mubr.f32.gmra.mrb[0].mxu0 %v986
    %v1167 = vpop.f32.mrb[0].mxu0
    %v1168 = vadd.f32 0.0, %v1167
    %v1169 = vpop.f32.mrb[0].mxu0
    %1170 = vdwg.mxu0
    %1171 = vxpose.xlu0.b32.start [1/16] %v1072, 128
    %1172 = vxpose.xlu0.b32.cont [2/16] %v1077, 128
    %1173 = vxpose.xlu0.b32.cont [3/16] 0.0, 128
    %1174 = vxpose.xlu0.b32.cont [4/16] 0.0, 128
    %1175 = vxpose.xlu0.b32.cont [5/16] 0.0, 128
    %1176 = vxpose.xlu0.b32.cont [6/16] 0.0, 128
    %1177 = vxpose.xlu0.b32.cont [7/16] 0.0, 128
    %1178 = vxpose.xlu0.b32.cont [8/16] 0.0, 128
    %1179 = vxpose.xlu0.b32.cont [9/16] 0.0, 128
    %1180 = vxpose.xlu0.b32.cont [10/16] 0.0, 128
    %1181 = vxpose.xlu0.b32.cont [11/16] 0.0, 128
    %1182 = vxpose.xlu0.b32.cont [12/16] 0.0, 128
    %1183 = vxpose.xlu0.b32.cont [13/16] 0.0, 128
    %1184 = vxpose.xlu0.b32.cont [14/16] 0.0, 128
    %1185 = vxpose.xlu0.b32.cont [15/16] 0.0, 128
    %1186 = vxpose.xlu0.b32.end [16/16] 0.0, 128
    %v1187 = vpop.trf.xlu0
    %v1188 = vpop.trf.xlu0
    %v1189 = vpop.trf.xlu0
    %v1190 = vpop.trf.xlu0
    %v1191 = vpop.trf.xlu0
    %v1192 = vpop.trf.xlu0
    %v1193 = vpop.trf.xlu0
    %v1194 = vpop.trf.xlu0
    %v1195 = vpop.trf.xlu0
    %v1196 = vpop.trf.xlu0
    %v1197 = vpop.trf.xlu0
    %v1198 = vpop.trf.xlu0
    %v1199 = vpop.trf.xlu0
    %v1200 = vpop.trf.xlu0
    %v1201 = vpop.trf.xlu0
    %v1202 = vpop.trf.xlu0
    %1204 = vset.pattern.permute.xlu0 0
    %1205 = vperm.xlu0 %1204, %v1163
    %v1206 = vpop.permute.xlu0 %1205
    %1209 = vset.pattern.permute.xlu0 0
    %1210 = vperm.xlu0 %1209, %v1168
    %v1211 = vpop.permute.xlu0 %1210
    %v1213 = vlaneseq
    %v1214 = vshrl.u32 %v1213, 7
    %v1215 = vsub.s32 0, %v1214
    %v1216 = vrot.slane %v1187, %v1215
    %v1217 = vadd.f32 %v1206, %v1216
    %v1218 = vadd.f32 %v1211, %v1216
    %v1219 = vmul.f32 %v1217, 0.2
    %v1220 = vmul.f32 %v1218, 0.2
    %v1221 = vmax.f32 %v1217, %v1219
    %v1222 = vmax.f32 %v1218, %v1220
    %v1223 = vadd.f32 %v1221, %v60
    %v1224 = vadd.f32 %v1222, %v61
    %v1225 = vsel %vm381, %v1223, -inf
    %1226 = vmax.xlane.f32.xlu0 %v1225
    %v1227 = vpop.xlane.xlu0 %1226
    %v1228 = vsel %vm381, %v1224, -inf
    %1229 = vmax.xlane.f32.xlu0 %v1228
    %v1230 = vpop.xlane.xlu0 %1229
    %v1231 = vsub.f32 %v1223, %v1227
    %v1232 = vsub.f32 %v1224, %v1230
    %v1233 = vmul.f32 %v1231, 1.442695
    %v1234 = vpow.pop %v1233
    %v1235 = vmul.f32 %v1232, 1.442695
    %v1236 = vpow.pop %v1235
    %v1237 = vsel %vm381, %v1234, 0.0
    %1238 = vadd.xlane.f32.xlu0 %v1237
    %v1239 = vpop.xlane.xlu0 %1238
    %v1240 = vsel %vm381, %v1236, 0.0
    %1241 = vadd.xlane.f32.xlu0 %v1240
    %v1242 = vpop.xlane.xlu0 %1241
    %v1243 = vrcp.pop %v1239
    %v1244 = vrcp.pop %v1242
    %v1245 = vmul.f32 %v1234, %v1243
    %v1246 = vmul.f32 %v1236, %v1244
    %1247 = vset.pattern.permute.xlu0 1
    %1248 = vperm.xlu0 %1247, %v1163
    %v1249 = vpop.permute.xlu0 %1248
    %1251 = vset.pattern.permute.xlu0 1
    %1252 = vperm.xlu0 %1251, %v1168
    %v1253 = vpop.permute.xlu0 %1252
    %v1255 = vlaneseq
    %v1256 = vshrl.u32 %v1255, 7
    %v1257 = vsub.s32 1, %v1256
    %v1258 = vrot.slane %v1187, %v1257
    %v1259 = vadd.f32 %v1249, %v1258
    %v1260 = vadd.f32 %v1253, %v1258
    %v1261 = vmul.f32 %v1259, 0.2
    %v1262 = vmul.f32 %v1260, 0.2
    %v1263 = vmax.f32 %v1259, %v1261
    %v1264 = vmax.f32 %v1260, %v1262
    %v1265 = vadd.f32 %v1263, %v60
    %v1266 = vadd.f32 %v1264, %v61
    %v1267 = vsel %vm381, %v1265, -inf
    %1268 = vmax.xlane.f32.xlu0 %v1267
    %v1269 = vpop.xlane.xlu0 %1268
    %v1270 = vsel %vm381, %v1266, -inf
    %1271 = vmax.xlane.f32.xlu0 %v1270
    %v1272 = vpop.xlane.xlu0 %1271
    %v1273 = vsub.f32 %v1265, %v1269
    %v1274 = vsub.f32 %v1266, %v1272
    %v1275 = vmul.f32 %v1273, 1.442695
    %v1276 = vpow.pop %v1275
    %v1277 = vmul.f32 %v1274, 1.442695
    %v1278 = vpow.pop %v1277
    %v1279 = vsel %vm381, %v1276, 0.0
    %1280 = vadd.xlane.f32.xlu0 %v1279
    %v1281 = vpop.xlane.xlu0 %1280
    %v1282 = vsel %vm381, %v1278, 0.0
    %1283 = vadd.xlane.f32.xlu0 %v1282
    %v1284 = vpop.xlane.xlu0 %1283
    %v1285 = vrcp.pop %v1281
    %v1286 = vrcp.pop %v1284
    %v1287 = vmul.f32 %v1276, %v1285
    %v1288 = vmul.f32 %v1278, %v1286
    %1289 = vset.pattern.permute.xlu0 2
    %1290 = vperm.xlu0 %1289, %v1163
    %v1291 = vpop.permute.xlu0 %1290
    %1293 = vset.pattern.permute.xlu0 2
    %1294 = vperm.xlu0 %1293, %v1168
    %v1295 = vpop.permute.xlu0 %1294
    %v1297 = vlaneseq
    %v1298 = vshrl.u32 %v1297, 7
    %v1299 = vsub.s32 2, %v1298
    %v1300 = vrot.slane %v1187, %v1299
    %v1301 = vadd.f32 %v1291, %v1300
    %v1302 = vadd.f32 %v1295, %v1300
    %v1303 = vmul.f32 %v1301, 0.2
    %v1304 = vmul.f32 %v1302, 0.2
    %v1305 = vmax.f32 %v1301, %v1303
    %v1306 = vmax.f32 %v1302, %v1304
    %v1307 = vadd.f32 %v1305, %v60
    %v1308 = vadd.f32 %v1306, %v61
    %v1309 = vsel %vm381, %v1307, -inf
    %1310 = vmax.xlane.f32.xlu0 %v1309
    %v1311 = vpop.xlane.xlu0 %1310
    %v1312 = vsel %vm381, %v1308, -inf
    %1313 = vmax.xlane.f32.xlu0 %v1312
    %v1314 = vpop.xlane.xlu0 %1313
    %v1315 = vsub.f32 %v1307, %v1311
    %v1316 = vsub.f32 %v1308, %v1314
    %v1317 = vmul.f32 %v1315, 1.442695
    %v1318 = vpow.pop %v1317
    %v1319 = vmul.f32 %v1316, 1.442695
    %v1320 = vpow.pop %v1319
    %v1321 = vsel %vm381, %v1318, 0.0
    %1322 = vadd.xlane.f32.xlu0 %v1321
    %v1323 = vpop.xlane.xlu0 %1322
    %v1324 = vsel %vm381, %v1320, 0.0
    %1325 = vadd.xlane.f32.xlu0 %v1324
    %v1326 = vpop.xlane.xlu0 %1325
    %v1327 = vrcp.pop %v1323
    %v1328 = vrcp.pop %v1326
    %v1329 = vmul.f32 %v1318, %v1327
    %v1330 = vmul.f32 %v1320, %v1328
    %1331 = vset.pattern.permute.xlu0 3
    %1332 = vperm.xlu0 %1331, %v1163
    %v1333 = vpop.permute.xlu0 %1332
    %1335 = vset.pattern.permute.xlu0 3
    %1336 = vperm.xlu0 %1335, %v1168
    %v1337 = vpop.permute.xlu0 %1336
    %v1339 = vlaneseq
    %v1340 = vshrl.u32 %v1339, 7
    %v1341 = vsub.s32 3, %v1340
    %v1342 = vrot.slane %v1187, %v1341
    %v1343 = vadd.f32 %v1333, %v1342
    %v1344 = vadd.f32 %v1337, %v1342
    %v1345 = vmul.f32 %v1343, 0.2
    %v1346 = vmul.f32 %v1344, 0.2
    %v1347 = vmax.f32 %v1343, %v1345
    %v1348 = vmax.f32 %v1344, %v1346
    %v1349 = vadd.f32 %v1347, %v60
    %v1350 = vadd.f32 %v1348, %v61
    %v1351 = vsel %vm381, %v1349, -inf
    %1352 = vmax.xlane.f32.xlu0 %v1351
    %v1353 = vpop.xlane.xlu0 %1352
    %v1354 = vsel %vm381, %v1350, -inf
    %1355 = vmax.xlane.f32.xlu0 %v1354
    %v1356 = vpop.xlane.xlu0 %1355
    %v1357 = vsub.f32 %v1349, %v1353
    %v1358 = vsub.f32 %v1350, %v1356
    %v1359 = vmul.f32 %v1357, 1.442695
    %v1360 = vpow.pop %v1359
    %v1361 = vmul.f32 %v1358, 1.442695
    %v1362 = vpow.pop %v1361
    %v1363 = vsel %vm381, %v1360, 0.0
    %1364 = vadd.xlane.f32.xlu0 %v1363
    %v1365 = vpop.xlane.xlu0 %1364
    %v1366 = vsel %vm381, %v1362, 0.0
    %1367 = vadd.xlane.f32.xlu0 %v1366
    %v1368 = vpop.xlane.xlu0 %1367
    %v1369 = vrcp.pop %v1365
    %v1370 = vrcp.pop %v1368
    %v1371 = vmul.f32 %v1360, %v1369
    %v1372 = vmul.f32 %v1362, %v1370
    %1373 = vset.pattern.permute.xlu0 4
    %1374 = vperm.xlu0 %1373, %v1163
    %v1375 = vpop.permute.xlu0 %1374
    %1377 = vset.pattern.permute.xlu0 4
    %1378 = vperm.xlu0 %1377, %v1168
    %v1379 = vpop.permute.xlu0 %1378
    %v1381 = vlaneseq
    %v1382 = vshrl.u32 %v1381, 7
    %v1383 = vsub.s32 4, %v1382
    %v1384 = vrot.slane %v1187, %v1383
    %v1385 = vadd.f32 %v1375, %v1384
    %v1386 = vadd.f32 %v1379, %v1384
    %v1387 = vmul.f32 %v1385, 0.2
    %v1388 = vmul.f32 %v1386, 0.2
    %v1389 = vmax.f32 %v1385, %v1387
    %v1390 = vmax.f32 %v1386, %v1388
    %v1391 = vadd.f32 %v1389, %v60
    %v1392 = vadd.f32 %v1390, %v61
    %v1393 = vsel %vm381, %v1391, -inf
    %1394 = vmax.xlane.f32.xlu0 %v1393
    %v1395 = vpop.xlane.xlu0 %1394
    %v1396 = vsel %vm381, %v1392, -inf
    %1397 = vmax.xlane.f32.xlu0 %v1396
    %v1398 = vpop.xlane.xlu0 %1397
    %v1399 = vsub.f32 %v1391, %v1395
    %v1400 = vsub.f32 %v1392, %v1398
    %v1401 = vmul.f32 %v1399, 1.442695
    %v1402 = vpow.pop %v1401
    %v1403 = vmul.f32 %v1400, 1.442695
    %v1404 = vpow.pop %v1403
    %v1405 = vsel %vm381, %v1402, 0.0
    %1406 = vadd.xlane.f32.xlu0 %v1405
    %v1407 = vpop.xlane.xlu0 %1406
    %v1408 = vsel %vm381, %v1404, 0.0
    %1409 = vadd.xlane.f32.xlu0 %v1408
    %v1410 = vpop.xlane.xlu0 %1409
    %v1411 = vrcp.pop %v1407
    %v1412 = vrcp.pop %v1410
    %v1413 = vmul.f32 %v1402, %v1411
    %v1414 = vmul.f32 %v1404, %v1412
    %1415 = vset.pattern.permute.xlu0 5
    %1416 = vperm.xlu0 %1415, %v1163
    %v1417 = vpop.permute.xlu0 %1416
    %1419 = vset.pattern.permute.xlu0 5
    %1420 = vperm.xlu0 %1419, %v1168
    %v1421 = vpop.permute.xlu0 %1420
    %v1423 = vlaneseq
    %v1424 = vshrl.u32 %v1423, 7
    %v1425 = vsub.s32 5, %v1424
    %v1426 = vrot.slane %v1187, %v1425
    %v1427 = vadd.f32 %v1417, %v1426
    %v1428 = vadd.f32 %v1421, %v1426
    %v1429 = vmul.f32 %v1427, 0.2
    %v1430 = vmul.f32 %v1428, 0.2
    %v1431 = vmax.f32 %v1427, %v1429
    %v1432 = vmax.f32 %v1428, %v1430
    %v1433 = vadd.f32 %v1431, %v60
    %v1434 = vadd.f32 %v1432, %v61
    %v1435 = vsel %vm381, %v1433, -inf
    %1436 = vmax.xlane.f32.xlu0 %v1435
    %v1437 = vpop.xlane.xlu0 %1436
    %v1438 = vsel %vm381, %v1434, -inf
    %1439 = vmax.xlane.f32.xlu0 %v1438
    %v1440 = vpop.xlane.xlu0 %1439
    %v1441 = vsub.f32 %v1433, %v1437
    %v1442 = vsub.f32 %v1434, %v1440
    %v1443 = vmul.f32 %v1441, 1.442695
    %v1444 = vpow.pop %v1443
    %v1445 = vmul.f32 %v1442, 1.442695
    %v1446 = vpow.pop %v1445
    %v1447 = vsel %vm381, %v1444, 0.0
    %1448 = vadd.xlane.f32.xlu0 %v1447
    %v1449 = vpop.xlane.xlu0 %1448
    %v1450 = vsel %vm381, %v1446, 0.0
    %1451 = vadd.xlane.f32.xlu0 %v1450
    %v1452 = vpop.xlane.xlu0 %1451
    %v1453 = vrcp.pop %v1449
    %v1454 = vrcp.pop %v1452
    %v1455 = vmul.f32 %v1444, %v1453
    %v1456 = vmul.f32 %v1446, %v1454
    %1457 = vset.pattern.permute.xlu0 6
    %1458 = vperm.xlu0 %1457, %v1163
    %v1459 = vpop.permute.xlu0 %1458
    %1461 = vset.pattern.permute.xlu0 6
    %1462 = vperm.xlu0 %1461, %v1168
    %v1463 = vpop.permute.xlu0 %1462
    %v1465 = vlaneseq
    %v1466 = vshrl.u32 %v1465, 7
    %v1467 = vsub.s32 6, %v1466
    %v1468 = vrot.slane %v1187, %v1467
    %v1469 = vadd.f32 %v1459, %v1468
    %v1470 = vadd.f32 %v1463, %v1468
    %v1471 = vmul.f32 %v1469, 0.2
    %v1472 = vmul.f32 %v1470, 0.2
    %v1473 = vmax.f32 %v1469, %v1471
    %v1474 = vmax.f32 %v1470, %v1472
    %v1475 = vadd.f32 %v1473, %v60
    %v1476 = vadd.f32 %v1474, %v61
    %v1477 = vsel %vm381, %v1475, -inf
    %1478 = vmax.xlane.f32.xlu0 %v1477
    %v1479 = vpop.xlane.xlu0 %1478
    %v1480 = vsel %vm381, %v1476, -inf
    %1481 = vmax.xlane.f32.xlu0 %v1480
    %v1482 = vpop.xlane.xlu0 %1481
    %v1483 = vsub.f32 %v1475, %v1479
    %v1484 = vsub.f32 %v1476, %v1482
    %v1485 = vmul.f32 %v1483, 1.442695
    %v1486 = vpow.pop %v1485
    %v1487 = vmul.f32 %v1484, 1.442695
    %v1488 = vpow.pop %v1487
    %v1489 = vsel %vm381, %v1486, 0.0
    %1490 = vadd.xlane.f32.xlu0 %v1489
    %v1491 = vpop.xlane.xlu0 %1490
    %v1492 = vsel %vm381, %v1488, 0.0
    %1493 = vadd.xlane.f32.xlu0 %v1492
    %v1494 = vpop.xlane.xlu0 %1493
    %v1495 = vrcp.pop %v1491
    %v1496 = vrcp.pop %v1494
    %v1497 = vmul.f32 %v1486, %v1495
    %v1498 = vmul.f32 %v1488, %v1496
    %1499 = vset.pattern.permute.xlu0 7
    %1500 = vperm.xlu0 %1499, %v1163
    %v1501 = vpop.permute.xlu0 %1500
    %1503 = vset.pattern.permute.xlu0 7
    %1504 = vperm.xlu0 %1503, %v1168
    %v1505 = vpop.permute.xlu0 %1504
    %v1507 = vlaneseq
    %v1508 = vshrl.u32 %v1507, 7
    %v1509 = vsub.s32 7, %v1508
    %v1510 = vrot.slane %v1187, %v1509
    %v1511 = vadd.f32 %v1501, %v1510
    %v1512 = vadd.f32 %v1505, %v1510
    %v1513 = vmul.f32 %v1511, 0.2
    %v1514 = vmul.f32 %v1512, 0.2
    %v1515 = vmax.f32 %v1511, %v1513
    %v1516 = vmax.f32 %v1512, %v1514
    %v1517 = vadd.f32 %v1515, %v60
    %v1518 = vadd.f32 %v1516, %v61
    %v1519 = vsel %vm381, %v1517, -inf
    %1520 = vmax.xlane.f32.xlu0 %v1519
    %v1521 = vpop.xlane.xlu0 %1520
    %v1522 = vsel %vm381, %v1518, -inf
    %1523 = vmax.xlane.f32.xlu0 %v1522
    %v1524 = vpop.xlane.xlu0 %1523
    %v1525 = vsub.f32 %v1517, %v1521
    %v1526 = vsub.f32 %v1518, %v1524
    %v1527 = vmul.f32 %v1525, 1.442695
    %v1528 = vpow.pop %v1527
    %v1529 = vmul.f32 %v1526, 1.442695
    %v1530 = vpow.pop %v1529
    %v1531 = vsel %vm381, %v1528, 0.0
    %1532 = vadd.xlane.f32.xlu0 %v1531
    %v1533 = vpop.xlane.xlu0 %1532
    %v1534 = vsel %vm381, %v1530, 0.0
    %1535 = vadd.xlane.f32.xlu0 %v1534
    %v1536 = vpop.xlane.xlu0 %1535
    %v1537 = vrcp.pop %v1533
    %v1538 = vrcp.pop %v1536
    %v1539 = vmul.f32 %v1528, %v1537
    %v1540 = vmul.f32 %v1530, %v1538
    %1543 = vrot.lane.b32.xlu0 %v1287, 16
    %v1544 = vpop.permute.xlu0 %1543
    %1545 = vrot.lane.b32.xlu0 %v1288, 16
    %v1546 = vpop.permute.xlu0 %1545
    %1551 = vrot.lane.b32.xlu0 %v1329, 32
    %v1552 = vpop.permute.xlu0 %1551
    %1553 = vrot.lane.b32.xlu0 %v1330, 32
    %v1554 = vpop.permute.xlu0 %1553
    %1559 = vrot.lane.b32.xlu0 %v1371, 48
    %v1560 = vpop.permute.xlu0 %1559
    %1561 = vrot.lane.b32.xlu0 %v1372, 48
    %v1562 = vpop.permute.xlu0 %1561
    %1567 = vrot.lane.b32.xlu0 %v1413, 64
    %v1568 = vpop.permute.xlu0 %1567
    %1569 = vrot.lane.b32.xlu0 %v1414, 64
    %v1570 = vpop.permute.xlu0 %1569
    %1575 = vrot.lane.b32.xlu0 %v1455, 80
    %v1576 = vpop.permute.xlu0 %1575
    %1577 = vrot.lane.b32.xlu0 %v1456, 80
    %v1578 = vpop.permute.xlu0 %1577
    %1583 = vrot.lane.b32.xlu0 %v1497, 96
    %v1584 = vpop.permute.xlu0 %1583
    %1585 = vrot.lane.b32.xlu0 %v1498, 96
    %v1586 = vpop.permute.xlu0 %1585
    %1591 = vrot.lane.b32.xlu0 %v1539, 112
    %v1592 = vpop.permute.xlu0 %1591
    %1593 = vrot.lane.b32.xlu0 %v1540, 112
    %v1594 = vpop.permute.xlu0 %1593
    %v1597 = vsel %vm381, %v1245, %v1544
    %v1598 = vsel %vm381, %v1246, %v1546
    %v1599 = vsel %vm756, %v1597, %v1552
    %v1600 = vsel %vm756, %v1598, %v1554
    %v1601 = vsel %vm759, %v1599, %v1560
    %v1602 = vsel %vm759, %v1600, %v1562
    %v1603 = vsel %vm762, %v1601, %v1568
    %v1604 = vsel %vm762, %v1602, %v1570
    %v1605 = vsel %vm765, %v1603, %v1576
    %v1606 = vsel %vm765, %v1604, %v1578
    %v1607 = vsel %vm768, %v1605, %v1584
    %v1608 = vsel %vm768, %v1606, %v1586
    %v1609 = vsel %vm771, %v1607, %v1592
    %v1610 = vsel %vm771, %v1608, %v1594
    %1613 = vrot.lane.b32.xlu0 %v981, 112
    %v1614 = vpop.permute.xlu0 %1613
    %1615 = vrot.lane.b32.xlu0 %v986, 112
    %v1616 = vpop.permute.xlu0 %1615
    %1619 = vrot.lane.b32.xlu0 %v981, 96
    %v1620 = vpop.permute.xlu0 %1619
    %1621 = vrot.lane.b32.xlu0 %v986, 96
    %v1622 = vpop.permute.xlu0 %1621
    %1625 = vrot.lane.b32.xlu0 %v981, 80
    %v1626 = vpop.permute.xlu0 %1625
    %1627 = vrot.lane.b32.xlu0 %v986, 80
    %v1628 = vpop.permute.xlu0 %1627
    %1631 = vrot.lane.b32.xlu0 %v981, 64
    %v1632 = vpop.permute.xlu0 %1631
    %1633 = vrot.lane.b32.xlu0 %v986, 64
    %v1634 = vpop.permute.xlu0 %1633
    %1637 = vrot.lane.b32.xlu0 %v981, 48
    %v1638 = vpop.permute.xlu0 %1637
    %1639 = vrot.lane.b32.xlu0 %v986, 48
    %v1640 = vpop.permute.xlu0 %1639
    %1643 = vrot.lane.b32.xlu0 %v981, 32
    %v1644 = vpop.permute.xlu0 %1643
    %1645 = vrot.lane.b32.xlu0 %v986, 32
    %v1646 = vpop.permute.xlu0 %1645
    %1649 = vrot.lane.b32.xlu0 %v981, 16
    %v1650 = vpop.permute.xlu0 %1649
    %1651 = vrot.lane.b32.xlu0 %v986, 16
    %v1652 = vpop.permute.xlu0 %1651
    %1655 = vmatprep.subr.mxu0 0.0
    %1656 = vmatpush1.msra.mxu0 %v981
    %1657 = vmatprep.subr.mxu0 0.0
    %1658 = vmatpush1.msra.mxu0 %v986
    %1659 = vmatprep.subr.mxu0 0.0
    %1660 = vmatpush1.msra.mxu0 %v1614
    %1661 = vmatprep.subr.mxu0 0.0
    %1662 = vmatpush1.msra.mxu0 %v1616
    %1663 = vmatprep.subr.mxu0 0.0
    %1664 = vmatpush1.msra.mxu0 %v1620
    %1665 = vmatprep.subr.mxu0 0.0
    %1666 = vmatpush1.msra.mxu0 %v1622
    %1667 = vmatprep.subr.mxu0 0.0
    %1668 = vmatpush1.msra.mxu0 %v1626
    %1669 = vmatprep.subr.mxu0 0.0
    %1670 = vmatpush1.msra.mxu0 %v1628
    %1671 = vmatprep.subr.mxu0 0.0
    %1672 = vmatpush1.msra.mxu0 %v1632
    %1673 = vmatprep.subr.mxu0 0.0
    %1674 = vmatpush1.msra.mxu0 %v1634
    %1675 = vmatprep.subr.mxu0 0.0
    %1676 = vmatpush1.msra.mxu0 %v1638
    %1677 = vmatprep.subr.mxu0 0.0
    %1678 = vmatpush1.msra.mxu0 %v1640
    %1679 = vmatprep.subr.mxu0 0.0
    %1680 = vmatpush1.msra.mxu0 %v1644
    %1681 = vmatprep.subr.mxu0 0.0
    %1682 = vmatpush1.msra.mxu0 %v1646
    %1683 = vmatprep.subr.mxu0 0.0
    %1684 = vmatpush1.msra.mxu0 %v1650
    %1685 = vmatprep.subr.mxu0 0.0
    %1686 = vmatpush1.msra.mxu0 %v1652
    %1687 = vmatprep.subr.mxu0 0.0
    %1688 = vmatpush1.msra.mxu0 0.0
    %1689 = vmatprep.subr.mxu0 0.0
    %1690 = vmatpush1.msra.mxu0 0.0
    %1691 = vmatprep.subr.mxu0 0.0
    %1692 = vmatpush1.msra.mxu0 0.0
    %1693 = vmatprep.subr.mxu0 0.0
    %1694 = vmatpush1.msra.mxu0 0.0
    %1695 = vmatprep.subr.mxu0 0.0
    %1696 = vmatpush1.msra.mxu0 0.0
    %1697 = vmatprep.subr.mxu0 0.0
    %1698 = vmatpush1.msra.mxu0 0.0
    %1699 = vmatprep.subr.mxu0 0.0
    %1700 = vmatpush1.msra.mxu0 0.0
    %1701 = vmatprep.subr.mxu0 0.0
    %1702 = vmatpush1.msra.mxu0 0.0
    %1703 = vmatprep.subr.mxu0 0.0
    %1704 = vmatpush1.msra.mxu0 0.0
    %1705 = vmatprep.subr.mxu0 0.0
    %1706 = vmatpush1.msra.mxu0 0.0
    %1707 = vmatprep.subr.mxu0 0.0
    %1708 = vmatpush1.msra.mxu0 0.0
    %1709 = vmatprep.subr.mxu0 0.0
    %1710 = vmatpush1.msra.mxu0 0.0
    %1711 = vmatprep.subr.mxu0 0.0
    %1712 = vmatpush1.msra.mxu0 0.0
    %1713 = vmatprep.subr.mxu0 0.0
    %1714 = vmatpush1.msra.mxu0 0.0
    %1715 = vmatprep.subr.mxu0 0.0
    %1716 = vmatpush1.msra.mxu0 0.0
    %1717 = vmatprep.subr.mxu0 0.0
    %1718 = vmatpush1.msra.mxu0 0.0
    %1719 = vmatprep.mubr.f32.mxu0 0.0
    %1720 = vmatmul.mubr.f32.gmra.mrb[0].mxu0 %v1609
    %v1721 = vpop.f32.mrb[0].mxu0
    %v1722 = vadd.f32 0.0, %v1721
    %v1723 = vpop.f32.mrb[0].mxu0
    %1724 = vmatprep.mubr.f32.mxu0 0.0
    %1725 = vmatmul.mubr.f32.gmra.mrb[0].mxu0 %v1610
    %v1726 = vpop.f32.mrb[0].mxu0
    %v1727 = vadd.f32 0.0, %v1726
    %v1728 = vpop.f32.mrb[0].mxu0
    %1729 = vdwg.mxu0
    %v1730 = vmul.f32 %v1722, 0.125
    %v1731 = vmul.f32 %v1727, 0.125
    %v1732 = vld [vmem:[%s9] sm:$0x1]
    %v1734 = vlaneseq
    %v1735 = vshrl.u32 %v1734, 7
    %v1736 = vsub.s32 0, %v1735
    %v1737 = vrot.slane %v1732, %v1736
    %v1739 = vadd.f32 %v1730, %v1737
    %v1740 = vadd.f32 %v1731, %v1737
    %v1741 = vmax.f32 %v1739, 0.0
    %v1742 = vmax.f32 %v1740, 0.0
    %v1743 = vld [vmem:[%s10] sm:$0xff]
    %v1744 = vld [vmem:[%s10 + $0x8] sm:$0xff]
    %v1746 = vsel %vm381, %v1741, 0
    %v1749 = vsel %vm381, %v1742, 0
    %1751 = vmatprep.subr.mxu0 0.0
    %1752 = vmatpush1.msra.mxu0 %v1743
    %1753 = vmatprep.subr.mxu0 0.0
    %1754 = vmatpush1.msra.mxu0 %v1744
    %1755 = vmatprep.subr.mxu0 0.0
    %1756 = vmatpush1.msra.mxu0 0.0
    %1757 = vmatprep.subr.mxu0 0.0
    %1758 = vmatpush1.msra.mxu0 0.0
    %1759 = vmatprep.subr.mxu0 0.0
    %1760 = vmatpush1.msra.mxu0 0.0
    %1761 = vmatprep.subr.mxu0 0.0
    %1762 = vmatpush1.msra.mxu0 0.0
    %1763 = vmatprep.subr.mxu0 0.0
    %1764 = vmatpush1.msra.mxu0 0.0
    %1765 = vmatprep.subr.mxu0 0.0
    %1766 = vmatpush1.msra.mxu0 0.0
    %1767 = vmatprep.subr.mxu0 0.0
    %1768 = vmatpush1.msra.mxu0 0.0
    %1769 = vmatprep.subr.mxu0 0.0
    %1770 = vmatpush1.msra.mxu0 0.0
    %1771 = vmatprep.subr.mxu0 0.0
    %1772 = vmatpush1.msra.mxu0 0.0
    %1773 = vmatprep.subr.mxu0 0.0
    %1774 = vmatpush1.msra.mxu0 0.0
    %1775 = vmatprep.subr.mxu0 0.0
    %1776 = vmatpush1.msra.mxu0 0.0
    %1777 = vmatprep.subr.mxu0 0.0
    %1778 = vmatpush1.msra.mxu0 0.0
    %1779 = vmatprep.subr.mxu0 0.0
    %1780 = vmatpush1.msra.mxu0 0.0
    %1781 = vmatprep.subr.mxu0 0.0
    %1782 = vmatpush1.msra.mxu0 0.0
    %1783 = vmatprep.subr.mxu0 0.0
    %1784 = vmatpush1.msra.mxu0 0.0
    %1785 = vmatprep.subr.mxu0 0.0
    %1786 = vmatpush1.msra.mxu0 0.0
    %1787 = vmatprep.subr.mxu0 0.0
    %1788 = vmatpush1.msra.mxu0 0.0
    %1789 = vmatprep.subr.mxu0 0.0
    %1790 = vmatpush1.msra.mxu0 0.0
    %1791 = vmatprep.subr.mxu0 0.0
    %1792 = vmatpush1.msra.mxu0 0.0
    %1793 = vmatprep.subr.mxu0 0.0
    %1794 = vmatpush1.msra.mxu0 0.0
    %1795 = vmatprep.subr.mxu0 0.0
    %1796 = vmatpush1.msra.mxu0 0.0
    %1797 = vmatprep.subr.mxu0 0.0
    %1798 = vmatpush1.msra.mxu0 0.0
    %1799 = vmatprep.subr.mxu0 0.0
    %1800 = vmatpush1.msra.mxu0 0.0
    %1801 = vmatprep.subr.mxu0 0.0
    %1802 = vmatpush1.msra.mxu0 0.0
    %1803 = vmatprep.subr.mxu0 0.0
    %1804 = vmatpush1.msra.mxu0 0.0
    %1805 = vmatprep.subr.mxu0 0.0
    %1806 = vmatpush1.msra.mxu0 0.0
    %1807 = vmatprep.subr.mxu0 0.0
    %1808 = vmatpush1.msra.mxu0 0.0
    %1809 = vmatprep.subr.mxu0 0.0
    %1810 = vmatpush1.msra.mxu0 0.0
    %1811 = vmatprep.subr.mxu0 0.0
    %1812 = vmatpush1.msra.mxu0 0.0
    %1813 = vmatprep.subr.mxu0 0.0
    %1814 = vmatpush1.msra.mxu0 0.0
    %1815 = vmatprep.mubr.f32.mxu0 0.0
    %1816 = vmatmul.mubr.f32.gmra.mrb[0].mxu0 %v1746
    %v1817 = vpop.f32.mrb[0].mxu0
    %v1818 = vadd.f32 0.0, %v1817
    %v1819 = vpop.f32.mrb[0].mxu0
    %1820 = vmatprep.mubr.f32.mxu0 0.0
    %1821 = vmatmul.mubr.f32.gmra.mrb[0].mxu0 %v1749
    %v1822 = vpop.f32.mrb[0].mxu0
    %v1823 = vadd.f32 0.0, %v1822
    %v1824 = vpop.f32.mrb[0].mxu0
    %1825 = vdwg.mxu0
    %v1826 = vld [vmem:[%s11] sm:$0xff]
    %v1828 = vsel %vm63, %v1818, 0
    %v1831 = vsel %vm63, %v1823, 0
    %1833 = vmatprep.subr.mxu0 0.0
    %1834 = vmatpush1.msra.mxu0 %v1826
    %1835 = vmatprep.subr.mxu0 0.0
    %1836 = vmatpush1.msra.mxu0 0.0
    %1837 = vmatprep.subr.mxu0 0.0
    %1838 = vmatpush1.msra.mxu0 0.0
    %1839 = vmatprep.subr.mxu0 0.0
    %1840 = vmatpush1.msra.mxu0 0.0
    %1841 = vmatprep.subr.mxu0 0.0
    %1842 = vmatpush1.msra.mxu0 0.0
    %1843 = vmatprep.subr.mxu0 0.0
    %1844 = vmatpush1.msra.mxu0 0.0
    %1845 = vmatprep.subr.mxu0 0.0
    %1846 = vmatpush1.msra.mxu0 0.0
    %1847 = vmatprep.subr.mxu0 0.0
    %1848 = vmatpush1.msra.mxu0 0.0
    %1849 = vmatprep.subr.mxu0 0.0
    %1850 = vmatpush1.msra.mxu0 0.0
    %1851 = vmatprep.subr.mxu0 0.0
    %1852 = vmatpush1.msra.mxu0 0.0
    %1853 = vmatprep.subr.mxu0 0.0
    %1854 = vmatpush1.msra.mxu0 0.0
    %1855 = vmatprep.subr.mxu0 0.0
    %1856 = vmatpush1.msra.mxu0 0.0
    %1857 = vmatprep.subr.mxu0 0.0
    %1858 = vmatpush1.msra.mxu0 0.0
    %1859 = vmatprep.subr.mxu0 0.0
    %1860 = vmatpush1.msra.mxu0 0.0
    %1861 = vmatprep.subr.mxu0 0.0
    %1862 = vmatpush1.msra.mxu0 0.0
    %1863 = vmatprep.subr.mxu0 0.0
    %1864 = vmatpush1.msra.mxu0 0.0
    %1865 = vmatprep.subr.mxu0 0.0
    %1866 = vmatpush1.msra.mxu0 0.0
    %1867 = vmatprep.subr.mxu0 0.0
    %1868 = vmatpush1.msra.mxu0 0.0
    %1869 = vmatprep.subr.mxu0 0.0
    %1870 = vmatpush1.msra.mxu0 0.0
    %1871 = vmatprep.subr.mxu0 0.0
    %1872 = vmatpush1.msra.mxu0 0.0
    %1873 = vmatprep.subr.mxu0 0.0
    %1874 = vmatpush1.msra.mxu0 0.0
    %1875 = vmatprep.subr.mxu0 0.0
    %1876 = vmatpush1.msra.mxu0 0.0
    %1877 = vmatprep.subr.mxu0 0.0
    %1878 = vmatpush1.msra.mxu0 0.0
    %1879 = vmatprep.subr.mxu0 0.0
    %1880 = vmatpush1.msra.mxu0 0.0
    %1881 = vmatprep.subr.mxu0 0.0
    %1882 = vmatpush1.msra.mxu0 0.0
    %1883 = vmatprep.subr.mxu0 0.0
    %1884 = vmatpush1.msra.mxu0 0.0
    %1885 = vmatprep.subr.mxu0 0.0
    %1886 = vmatpush1.msra.mxu0 0.0
    %1887 = vmatprep.subr.mxu0 0.0
    %1888 = vmatpush1.msra.mxu0 0.0
    %1889 = vmatprep.subr.mxu0 0.0
    %1890 = vmatpush1.msra.mxu0 0.0
    %1891 = vmatprep.subr.mxu0 0.0
    %1892 = vmatpush1.msra.mxu0 0.0
    %1893 = vmatprep.subr.mxu0 0.0
    %1894 = vmatpush1.msra.mxu0 0.0
    %1895 = vmatprep.subr.mxu0 0.0
    %1896 = vmatpush1.msra.mxu0 0.0
    %1897 = vmatprep.mubr.f32.mxu0 0.0
    %1898 = vmatmul.mubr.f32.gmra.mrb[0].mxu0 %v1828
    %v1899 = vpop.f32.mrb[0].mxu0
    %v1900 = vadd.f32 0.0, %v1899
    %v1901 = vpop.f32.mrb[0].mxu0
    %1902 = vmatprep.mubr.f32.mxu0 0.0
    %1903 = vmatmul.mubr.f32.gmra.mrb[0].mxu0 %v1831
    %v1904 = vpop.f32.mrb[0].mxu0
    %v1905 = vadd.f32 0.0, %v1904
    %v1906 = vpop.f32.mrb[0].mxu0
    %1907 = vdwg.mxu0
    %v1908 = vld [vmem:[%s12] sm:$0xff]
    %1909 = vmatprep.subr.mxu0 0.0
    %1910 = vmatpush1.msra.mxu0 %v1908
    %1911 = vmatprep.subr.mxu0 0.0
    %1912 = vmatpush1.msra.mxu0 0.0
    %1913 = vmatprep.subr.mxu0 0.0
    %1914 = vmatpush1.msra.mxu0 0.0
    %1915 = vmatprep.subr.mxu0 0.0
    %1916 = vmatpush1.msra.mxu0 0.0
    %1917 = vmatprep.subr.mxu0 0.0
    %1918 = vmatpush1.msra.mxu0 0.0
    %1919 = vmatprep.subr.mxu0 0.0
    %1920 = vmatpush1.msra.mxu0 0.0
    %1921 = vmatprep.subr.mxu0 0.0
    %1922 = vmatpush1.msra.mxu0 0.0
    %1923 = vmatprep.subr.mxu0 0.0
    %1924 = vmatpush1.msra.mxu0 0.0
    %1925 = vmatprep.subr.mxu0 0.0
    %1926 = vmatpush1.msra.mxu0 0.0
    %1927 = vmatprep.subr.mxu0 0.0
    %1928 = vmatpush1.msra.mxu0 0.0
    %1929 = vmatprep.subr.mxu0 0.0
    %1930 = vmatpush1.msra.mxu0 0.0
    %1931 = vmatprep.subr.mxu0 0.0
    %1932 = vmatpush1.msra.mxu0 0.0
    %1933 = vmatprep.subr.mxu0 0.0
    %1934 = vmatpush1.msra.mxu0 0.0
    %1935 = vmatprep.subr.mxu0 0.0
    %1936 = vmatpush1.msra.mxu0 0.0
    %1937 = vmatprep.subr.mxu0 0.0
    %1938 = vmatpush1.msra.mxu0 0.0
    %1939 = vmatprep.subr.mxu0 0.0
    %1940 = vmatpush1.msra.mxu0 0.0
    %1941 = vmatprep.subr.mxu0 0.0
    %1942 = vmatpush1.msra.mxu0 0.0
    %1943 = vmatprep.subr.mxu0 0.0
    %1944 = vmatpush1.msra.mxu0 0.0
    %1945 = vmatprep.subr.mxu0 0.0
    %1946 = vmatpush1.msra.mxu0 0.0
    %1947 = vmatprep.subr.mxu0 0.0
    %1948 = vmatpush1.msra.mxu0 0.0
    %1949 = vmatprep.subr.mxu0 0.0
    %1950 = vmatpush1.msra.mxu0 0.0
    %1951 = vmatprep.subr.mxu0 0.0
    %1952 = vmatpush1.msra.mxu0 0.0
    %1953 = vmatprep.subr.mxu0 0.0
    %1954 = vmatpush1.msra.mxu0 0.0
    %1955 = vmatprep.subr.mxu0 0.0
    %1956 = vmatpush1.msra.mxu0 0.0
    %1957 = vmatprep.subr.mxu0 0.0
    %1958 = vmatpush1.msra.mxu0 0.0
    %1959 = vmatprep.subr.mxu0 0.0
    %1960 = vmatpush1.msra.mxu0 0.0
    %1961 = vmatprep.subr.mxu0 0.0
    %1962 = vmatpush1.msra.mxu0 0.0
    %1963 = vmatprep.subr.mxu0 0.0
    %1964 = vmatpush1.msra.mxu0 0.0
    %1965 = vmatprep.subr.mxu0 0.0
    %1966 = vmatpush1.msra.mxu0 0.0
    %1967 = vmatprep.subr.mxu0 0.0
    %1968 = vmatpush1.msra.mxu0 0.0
    %1969 = vmatprep.subr.mxu0 0.0
    %1970 = vmatpush1.msra.mxu0 0.0
    %1971 = vmatprep.subr.mxu0 0.0
    %1972 = vmatpush1.msra.mxu0 0.0
    %1973 = vmatprep.mubr.f32.mxu0 0.0
    %1974 = vmatmul.mubr.f32.gmra.mrb[0].mxu0 %v1828
    %v1975 = vpop.f32.mrb[0].mxu0
    %v1976 = vadd.f32 0.0, %v1975
    %v1977 = vpop.f32.mrb[0].mxu0
    %1978 = vmatprep.mubr.f32.mxu0 0.0
    %1979 = vmatmul.mubr.f32.gmra.mrb[0].mxu0 %v1831
    %v1980 = vpop.f32.mrb[0].mxu0
    %v1981 = vadd.f32 0.0, %v1980
    %v1982 = vpop.f32.mrb[0].mxu0
    %1983 = vdwg.mxu0
    %1984 = vxpose.xlu0.b32.start [1/16] %v1900, 128
    %1985 = vxpose.xlu0.b32.cont [2/16] %v1905, 128
    %1986 = vxpose.xlu0.b32.cont [3/16] 0.0, 128
    %1987 = vxpose.xlu0.b32.cont [4/16] 0.0, 128
    %1988 = vxpose.xlu0.b32.cont [5/16] 0.0, 128
    %1989 = vxpose.xlu0.b32.cont [6/16] 0.0, 128
    %1990 = vxpose.xlu0.b32.cont [7/16] 0.0, 128
    %1991 = vxpose.xlu0.b32.cont [8/16] 0.0, 128
    %1992 = vxpose.xlu0.b32.cont [9/16] 0.0, 128
    %1993 = vxpose.xlu0.b32.cont [10/16] 0.0, 128
    %1994 = vxpose.xlu0.b32.cont [11/16] 0.0, 128
    %1995 = vxpose.xlu0.b32.cont [12/16] 0.0, 128
    %1996 = vxpose.xlu0.b32.cont [13/16] 0.0, 128
    %1997 = vxpose.xlu0.b32.cont [14/16] 0.0, 128
    %1998 = vxpose.xlu0.b32.cont [15/16] 0.0, 128
    %1999 = vxpose.xlu0.b32.end [16/16] 0.0, 128
    %v2000 = vpop.trf.xlu0
    %v2001 = vpop.trf.xlu0
    %v2002 = vpop.trf.xlu0
    %v2003 = vpop.trf.xlu0
    %v2004 = vpop.trf.xlu0
    %v2005 = vpop.trf.xlu0
    %v2006 = vpop.trf.xlu0
    %v2007 = vpop.trf.xlu0
    %v2008 = vpop.trf.xlu0
    %v2009 = vpop.trf.xlu0
    %v2010 = vpop.trf.xlu0
    %v2011 = vpop.trf.xlu0
    %v2012 = vpop.trf.xlu0
    %v2013 = vpop.trf.xlu0
    %v2014 = vpop.trf.xlu0
    %v2015 = vpop.trf.xlu0
    %2017 = vset.pattern.permute.xlu0 0
    %2018 = vperm.xlu0 %2017, %v1976
    %v2019 = vpop.permute.xlu0 %2018
    %2022 = vset.pattern.permute.xlu0 0
    %2023 = vperm.xlu0 %2022, %v1981
    %v2024 = vpop.permute.xlu0 %2023
    %v2026 = vlaneseq
    %v2027 = vshrl.u32 %v2026, 7
    %v2028 = vsub.s32 0, %v2027
    %v2029 = vrot.slane %v2000, %v2028
    %v2030 = vadd.f32 %v2019, %v2029
    %v2031 = vadd.f32 %v2024, %v2029
    %v2032 = vmul.f32 %v2030, 0.2
    %v2033 = vmul.f32 %v2031, 0.2
    %v2034 = vmax.f32 %v2030, %v2032
    %v2035 = vmax.f32 %v2031, %v2033
    %v2036 = vadd.f32 %v2034, %v60
    %v2037 = vadd.f32 %v2035, %v61
    %v2038 = vsel %vm381, %v2036, -inf
    %2039 = vmax.xlane.f32.xlu0 %v2038
    %v2040 = vpop.xlane.xlu0 %2039
    %v2041 = vsel %vm381, %v2037, -inf
    %2042 = vmax.xlane.f32.xlu0 %v2041
    %v2043 = vpop.xlane.xlu0 %2042
    %v2044 = vsub.f32 %v2036, %v2040
    %v2045 = vsub.f32 %v2037, %v2043
    %v2046 = vmul.f32 %v2044, 1.442695
    %v2047 = vpow.pop %v2046
    %v2048 = vmul.f32 %v2045, 1.442695
    %v2049 = vpow.pop %v2048
    %v2050 = vsel %vm381, %v2047, 0.0
    %2051 = vadd.xlane.f32.xlu0 %v2050
    %v2052 = vpop.xlane.xlu0 %2051
    %v2053 = vsel %vm381, %v2049, 0.0
    %2054 = vadd.xlane.f32.xlu0 %v2053
    %v2055 = vpop.xlane.xlu0 %2054
    %v2056 = vrcp.pop %v2052
    %v2057 = vrcp.pop %v2055
    %v2058 = vmul.f32 %v2047, %v2056
    %v2059 = vmul.f32 %v2049, %v2057
    %v2060 = vld [vmem:[%s13] sm:$0x1]
    %v2062 = vlaneseq
    %v2063 = vshrl.u32 %v2062, 7
    %v2064 = vsub.s32 0, %v2063
    %v2065 = vrot.slane %v2060, %v2064
    %v2068 = vsel %vm381, %v2058, 0
    %v2071 = vsel %vm381, %v2059, 0
    %2073 = vmatprep.subr.mxu0 0.0
    %2074 = vmatpush1.msra.mxu0 %v1818
    %2075 = vmatprep.subr.mxu0 0.0
    %2076 = vmatpush1.msra.mxu0 %v1823
    %2077 = vmatprep.subr.mxu0 0.0
    %2078 = vmatpush1.msra.mxu0 0.0
    %2079 = vmatprep.subr.mxu0 0.0
    %2080 = vmatpush1.msra.mxu0 0.0
    %2081 = vmatprep.subr.mxu0 0.0
    %2082 = vmatpush1.msra.mxu0 0.0
    %2083 = vmatprep.subr.mxu0 0.0
    %2084 = vmatpush1.msra.mxu0 0.0
    %2085 = vmatprep.subr.mxu0 0.0
    %2086 = vmatpush1.msra.mxu0 0.0
    %2087 = vmatprep.subr.mxu0 0.0
    %2088 = vmatpush1.msra.mxu0 0.0
    %2089 = vmatprep.subr.mxu0 0.0
    %2090 = vmatpush1.msra.mxu0 0.0
    %2091 = vmatprep.subr.mxu0 0.0
    %2092 = vmatpush1.msra.mxu0 0.0
    %2093 = vmatprep.subr.mxu0 0.0
    %2094 = vmatpush1.msra.mxu0 0.0
    %2095 = vmatprep.subr.mxu0 0.0
    %2096 = vmatpush1.msra.mxu0 0.0
    %2097 = vmatprep.subr.mxu0 0.0
    %2098 = vmatpush1.msra.mxu0 0.0
    %2099 = vmatprep.subr.mxu0 0.0
    %2100 = vmatpush1.msra.mxu0 0.0
    %2101 = vmatprep.subr.mxu0 0.0
    %2102 = vmatpush1.msra.mxu0 0.0
    %2103 = vmatprep.subr.mxu0 0.0
    %2104 = vmatpush1.msra.mxu0 0.0
    %2105 = vmatprep.subr.mxu0 0.0
    %2106 = vmatpush1.msra.mxu0 0.0
    %2107 = vmatprep.subr.mxu0 0.0
    %2108 = vmatpush1.msra.mxu0 0.0
    %2109 = vmatprep.subr.mxu0 0.0
    %2110 = vmatpush1.msra.mxu0 0.0
    %2111 = vmatprep.subr.mxu0 0.0
    %2112 = vmatpush1.msra.mxu0 0.0
    %2113 = vmatprep.subr.mxu0 0.0
    %2114 = vmatpush1.msra.mxu0 0.0
    %2115 = vmatprep.subr.mxu0 0.0
    %2116 = vmatpush1.msra.mxu0 0.0
    %2117 = vmatprep.subr.mxu0 0.0
    %2118 = vmatpush1.msra.mxu0 0.0
    %2119 = vmatprep.subr.mxu0 0.0
    %2120 = vmatpush1.msra.mxu0 0.0
    %2121 = vmatprep.subr.mxu0 0.0
    %2122 = vmatpush1.msra.mxu0 0.0
    %2123 = vmatprep.subr.mxu0 0.0
    %2124 = vmatpush1.msra.mxu0 0.0
    %2125 = vmatprep.subr.mxu0 0.0
    %2126 = vmatpush1.msra.mxu0 0.0
    %2127 = vmatprep.subr.mxu0 0.0
    %2128 = vmatpush1.msra.mxu0 0.0
    %2129 = vmatprep.subr.mxu0 0.0
    %2130 = vmatpush1.msra.mxu0 0.0
    %2131 = vmatprep.subr.mxu0 0.0
    %2132 = vmatpush1.msra.mxu0 0.0
    %2133 = vmatprep.subr.mxu0 0.0
    %2134 = vmatpush1.msra.mxu0 0.0
    %2135 = vmatprep.subr.mxu0 0.0
    %2136 = vmatpush1.msra.mxu0 0.0
    %2137 = vmatprep.mubr.f32.mxu0 0.0
    %2138 = vmatmul.mubr.f32.gmra.mrb[0].mxu0 %v2068
    %v2139 = vpop.f32.mrb[0].mxu0
    %v2140 = vadd.f32 %v2065, %v2139
    %v2141 = vpop.f32.mrb[0].mxu0
    %2142 = vmatprep.mubr.f32.mxu0 0.0
    %2143 = vmatmul.mubr.f32.gmra.mrb[0].mxu0 %v2071
    %v2144 = vpop.f32.mrb[0].mxu0
    %v2145 = vadd.f32 %v2065, %v2144
    %v2146 = vpop.f32.mrb[0].mxu0
    %2147 = vdwg.mxu0
    %v2148 = vld [vmem:[%s14] sm:$0xff]
    %v2149 = vld [vmem:[%s15] sm:$0x1]
    %v2151 = vlaneseq
    %v2152 = vshrl.u32 %v2151, 7
    %v2153 = vsub.s32 0, %v2152
    %v2154 = vrot.slane %v2149, %v2153
    %v2157 = vsel %vm63, %v2140, 0
    %v2160 = vsel %vm63, %v2145, 0
    %2162 = vmatprep.subr.mxu0 0.0
    %2163 = vmatpush1.msra.mxu0 %v2148
    %2164 = vmatprep.subr.mxu0 0.0
    %2165 = vmatpush1.msra.mxu0 0.0
    %2166 = vmatprep.subr.mxu0 0.0
    %2167 = vmatpush1.msra.mxu0 0.0
    %2168 = vmatprep.subr.mxu0 0.0
    %2169 = vmatpush1.msra.mxu0 0.0
    %2170 = vmatprep.subr.mxu0 0.0
    %2171 = vmatpush1.msra.mxu0 0.0
    %2172 = vmatprep.subr.mxu0 0.0
    %2173 = vmatpush1.msra.mxu0 0.0
    %2174 = vmatprep.subr.mxu0 0.0
    %2175 = vmatpush1.msra.mxu0 0.0
    %2176 = vmatprep.subr.mxu0 0.0
    %2177 = vmatpush1.msra.mxu0 0.0
    %2178 = vmatprep.subr.mxu0 0.0
    %2179 = vmatpush1.msra.mxu0 0.0
    %2180 = vmatprep.subr.mxu0 0.0
    %2181 = vmatpush1.msra.mxu0 0.0
    %2182 = vmatprep.subr.mxu0 0.0
    %2183 = vmatpush1.msra.mxu0 0.0
    %2184 = vmatprep.subr.mxu0 0.0
    %2185 = vmatpush1.msra.mxu0 0.0
    %2186 = vmatprep.subr.mxu0 0.0
    %2187 = vmatpush1.msra.mxu0 0.0
    %2188 = vmatprep.subr.mxu0 0.0
    %2189 = vmatpush1.msra.mxu0 0.0
    %2190 = vmatprep.subr.mxu0 0.0
    %2191 = vmatpush1.msra.mxu0 0.0
    %2192 = vmatprep.subr.mxu0 0.0
    %2193 = vmatpush1.msra.mxu0 0.0
    %2194 = vmatprep.subr.mxu0 0.0
    %2195 = vmatpush1.msra.mxu0 0.0
    %2196 = vmatprep.subr.mxu0 0.0
    %2197 = vmatpush1.msra.mxu0 0.0
    %2198 = vmatprep.subr.mxu0 0.0
    %2199 = vmatpush1.msra.mxu0 0.0
    %2200 = vmatprep.subr.mxu0 0.0
    %2201 = vmatpush1.msra.mxu0 0.0
    %2202 = vmatprep.subr.mxu0 0.0
    %2203 = vmatpush1.msra.mxu0 0.0
    %2204 = vmatprep.subr.mxu0 0.0
    %2205 = vmatpush1.msra.mxu0 0.0
    %2206 = vmatprep.subr.mxu0 0.0
    %2207 = vmatpush1.msra.mxu0 0.0
    %2208 = vmatprep.subr.mxu0 0.0
    %2209 = vmatpush1.msra.mxu0 0.0
    %2210 = vmatprep.subr.mxu0 0.0
    %2211 = vmatpush1.msra.mxu0 0.0
    %2212 = vmatprep.subr.mxu0 0.0
    %2213 = vmatpush1.msra.mxu0 0.0
    %2214 = vmatprep.subr.mxu0 0.0
    %2215 = vmatpush1.msra.mxu0 0.0
    %2216 = vmatprep.subr.mxu0 0.0
    %2217 = vmatpush1.msra.mxu0 0.0
    %2218 = vmatprep.subr.mxu0 0.0
    %2219 = vmatpush1.msra.mxu0 0.0
    %2220 = vmatprep.subr.mxu0 0.0
    %2221 = vmatpush1.msra.mxu0 0.0
    %2222 = vmatprep.subr.mxu0 0.0
    %2223 = vmatpush1.msra.mxu0 0.0
    %2224 = vmatprep.subr.mxu0 0.0
    %2225 = vmatpush1.msra.mxu0 0.0
    %2226 = vmatprep.mubr.f32.mxu0 0.0
    %2227 = vmatmul.mubr.f32.gmra.mrb[0].mxu0 %v2157
    %v2228 = vpop.f32.mrb[0].mxu0
    %v2229 = vadd.f32 %v2154, %v2228
    %v2230 = vpop.f32.mrb[0].mxu0
    %2231 = vmatprep.mubr.f32.mxu0 0.0
    %2232 = vmatmul.mubr.f32.gmra.mrb[0].mxu0 %v2160
    %v2233 = vpop.f32.mrb[0].mxu0
    %v2234 = vadd.f32 %v2154, %v2233
    %v2235 = vpop.f32.mrb[0].mxu0
    %2236 = vdwg.mxu0
    %v2237 = vmul.f32 %v2229, 1.442695
    %v2238 = vpow.pop %v2237
    %v2239 = vmul.f32 %v2234, 1.442695
    %v2240 = vpow.pop %v2239
    %v2241 = vmax.f32 %v2238, 1e-08
    %v2242 = vmax.f32 %v2240, 1e-08
    %v2243 = vmin.f32 %v2241, 100.0
    %v2244 = vmin.f32 %v2242, 100.0
    %2245 = vrot.lane.b32.xlu0 %v2140, 16
    %v2246 = vpop.permute.xlu0 %2245
    %2247 = vrot.lane.b32.xlu0 %v2145, 16
    %v2248 = vpop.permute.xlu0 %2247
    %v2251 = vsel %vm63, %v2229, %v2243
    %v2252 = vsel %vm63, %v2234, %v2244
    %v2253 = vsel %vm381, %v2251, %v2246
    %v2254 = vsel %vm381, %v2252, %v2248
    %vm2255 = vcmask 195584
    %2256 = vst.msk [vmem:[#allocation2] sm:$0xff] %vm2255, %v2253
    %2257 = vst.msk [vmem:[#allocation2 + $0x8] sm:$0xff] %vm2255, %v2254
    // Predicated region
    $region66: #{tpu_custom_call.1} parent=1 // pred_check
      _
    $region67: #{tpu_custom_call.1} parent=1 // pred_check_branch
      %2259 = sbr.rel (0) target = $region69
    $region68: #{tpu_custom_call.1} parent=1 // pred_region
      %s2261 = ssub.s32 256, 256
      %2262 = vsyncadd [#allocation3], %s2261
      %s2263 = sshll.u32 [#allocation2], 4
      %s2264 = int_to_ptr.vmem [resolvable:$true] %s2263
      %2269 = dma.vmem_to_hbm [thread:$0]  %s2264, 256, %s16, [#allocation3], 128, 128, 8
    $region69: #{tpu_custom_call.1} parent=1 // pred_fallthru
      _
    // Predicated region
    $region70: #{tpu_custom_call.1} parent=1 // pred_check
      _
    $region71: #{tpu_custom_call.1} parent=1 // pred_check_branch
      %2271 = sbr.rel (0) target = $region73
    $region72: #{tpu_custom_call.1} parent=1 // pred_region
      %2272 = dma.done [#allocation3], 256
    $region73: #{tpu_custom_call.1} parent=1 // pred_fallthru
      _
    %2273 = vsyncpa [#allocation3], 1

</llo_original>
